<compile_context>
chip_gen: v6e
topology: v6e:2x2x1
jax: 0.10.0
libtpu: 0.0.40
codegen_flags: <defaults>
</compile_context>

<pallas_src>
import functools

import numpy as np
import jax
import jax.numpy as jnp
from jax.experimental import pallas as pl
from jax.experimental.pallas import tpu as pltpu

# ---------------- config (cfg['MODEL']['DECOMPOSITION']) ----------------
IN_CHANNEL = 4
MU_0 = 0.0
SIGMA_0 = 1.0
GAMMA_RHO = 1.0
PHI_RHO = 1e-4
GAMMA_UPSILON = 1.0
PHI_UPSILON = 1e-4
RETURN_FEATURE = False      # deep_feature is None in this configuration
HIDDEN = 32                 # hidden width of the stand-in heads


# --------------------------------------------------------------------------
# Fused Bayesian decomposition kernel (P images per grid step, lane-dense)
# --------------------------------------------------------------------------
def _bayes_fused_kernel(s_ref, ex_ref, em_ref, en_ref, mask_ref,
                        w1_ref, b1_ref, w2_ref, b2_ref, gnw_ref, gnb_ref,
                        # f32 outputs (loss-relevant)
                        pred_ref, kly_ref, klmux_ref, klsgx_ref, klmum_ref,
                        klsgm_ref, rho_ref, ups_ref, norm_ref,
                        # bf16 outputs (visualization only)
                        x_ref, mux_ref, sigx_ref, n_ref, m_ref,
                        *, P, C, H, W, mu_0, sigma_0, gamma_rho, phi_rho,
                        gamma_upsilon, phi_upsilon, training):
    HW = H * W
    PC = P * C
    f32 = jnp.float32

    s = s_ref[0]                                            # (PC, HW) lane-dense

    # ---- merged per-pixel heads: one MXU chain for both heads and all P
    # images (block-diagonal packed weights built in the wrapper).
    # TODO(synk): ResNet_shape / ResNet_appearance are not defined in the
    # reference file; deterministic per-pixel 2-layer 1x1-conv MLPs stand in.
    h = jnp.dot(w1_ref[...], s, preferred_element_type=f32) + b1_ref[...]
    h = jnp.maximum(h, 0.0)                                 # (2*P*hidden, HW)
    feat = jnp.dot(w2_ref[...], h, preferred_element_type=f32) + b2_ref[...]

    # 8-sublane-aligned slices (row order fixed by the weight packing).
    mu_x = feat[0 * PC:1 * PC]
    log_var_x = jnp.clip(feat[1 * PC:2 * PC], -20.0, 0.0)
    mu_m = feat[2 * PC:3 * PC]
    log_var_m = jnp.clip(feat[3 * PC:4 * PC], -20.0, 0.0)

    # ---- reparameterized sampling (eps supplied as inputs).
    sigma_x = jnp.exp(0.5 * log_var_x)
    x = ex_ref[0] * sigma_x + mu_x
    m = em_ref[0] * jnp.exp(0.5 * log_var_m) + mu_m

    residual = s - (x + m)
    rho = (2.0 * gamma_rho + 1.0) / (residual * residual + 2.0 * phi_rho)
    n = en_ref[0] * jax.lax.rsqrt(rho) + m

    # ---- depthwise 3x3 "Dx" (center 1, 4-neighbours -1/4, zero padding=1) on
    # the flattened (PC, H*W) layout: zero-filled lane shifts + precomputed
    # row-edge masks (left/right).  Up/down zero-padding comes out of the
    # zero fill for free.
    def shift(v, k):          # result[:, j] = v[:, j - k] (zeros shifted in)
        if k > 0:
            return jnp.concatenate(
                [jnp.zeros((PC, k), f32), v[:, :HW - k]], axis=1)
        kk = -k
        return jnp.concatenate(
            [v[:, kk:], jnp.zeros((PC, kk), f32)], axis=1)

    up = shift(mu_x, W)
    down = shift(mu_x, -W)
    left = mask_ref[0:1] * shift(mu_x, 1)
    right = mask_ref[1:2] * shift(mu_x, -1)
    diff_x = mu_x - 0.25 * (up + down + left + right)

    dd = diff_x * diff_x
    two_exp_lvx = 2.0 * jnp.exp(log_var_x)
    alpha_ups = 2.0 * gamma_upsilon + float(C)

    # ---- per-image channel reductions (P images stacked on the sublane axis,
    # so each reduction runs on its own C-row half).
    ups_rows, klmux_rows, klsgx_rows = [], [], []
    for p in range(P):
        sl = slice(p * C, (p + 1) * C)
        sdd = jnp.sum(dd[sl], axis=0, keepdims=True)            # (1, HW)
        stel = jnp.sum(two_exp_lvx[sl], axis=0, keepdims=True)
        slvx = jnp.sum(log_var_x[sl], axis=0, keepdims=True)
        u = alpha_ups / (sdd + stel + 2.0 * phi_upsilon)
        ups_rows.append(u)
        klmux_rows.append(sdd * u)
        klsgx_rows.append(stel * u - slvx)

    def stack_rows(rows):
        return rows[0] if len(rows) == 1 else jnp.concatenate(rows, axis=0)

    ups = stack_rows(ups_rows)                                   # (P, HW)
    kl_mu_x = stack_rows(klmux_rows)
    kl_sigma_x = stack_rows(klsgx_rows)

    kl_y = residual * rho * residual
    kl_mu_m = sigma_0 * (mu_m - mu_0) * (mu_m - mu_0)
    kl_sigma_m = sigma_0 * jnp.exp(log_var_m) - log_var_m

    # ---- GroupNorm(C, C): per-(image, channel) normalization over H*W lanes.
    pred_in = x if training else mu_x
    inv_hw = 1.0 / float(HW)
    mean = jnp.sum(pred_in, axis=1, keepdims=True) * inv_hw
    d = pred_in - mean
    var = jnp.sum(d * d, axis=1, keepdims=True) * inv_hw
    pred = d * jax.lax.rsqrt(var + 1e-5) * gnw_ref[...] + gnb_ref[...]

    # ---- per-step partial of normalization = sum(rho); lane-dense store,
    # finished with a tiny XLA reduce in the wrapper.
    t = jnp.sum(jnp.sum(rho, axis=1, keepdims=True), axis=0, keepdims=True)
    norm_ref[0] = jnp.broadcast_to(t, (1, 128))

    # ---- stores (loss tensors f32, visualization tensors bf16).
    pred_ref[0] = pred
    kly_ref[0] = kl_y
    klmux_ref[0] = kl_mu_x
    klsgx_ref[0] = kl_sigma_x
    klmum_ref[0] = kl_mu_m
    klsgm_ref[0] = kl_sigma_m
    rho_ref[0] = rho
    ups_ref[0] = ups
    x_ref[0] = x.astype(jnp.bfloat16)
    mux_ref[0] = mu_x.astype(jnp.bfloat16)
    sigx_ref[0] = sigma_x.astype(jnp.bfloat16)
    n_ref[0] = n.astype(jnp.bfloat16)
    m_ref[0] = m.astype(jnp.bfloat16)


# --------------------------------------------------------------------------
# Parameter packing: P images per step + merged shape/appearance heads.
# --------------------------------------------------------------------------
def _pack_params(params, P, C, hidden):
    w1s, b1s = params['shape_w1'], params['shape_b1']        # (hidden, C), (hidden, 1)
    w2s, b2s = params['shape_w2'], params['shape_b2']        # (2C, hidden), (2C, 1)
    w1a, b1a = params['app_w1'], params['app_b1']
    w2a, b2a = params['app_w2'], params['app_b2']

    def block_diag(w):
        o, i = w.shape
        out = jnp.zeros((P * o, P * i), w.dtype)
        for p in range(P):
            out = out.at[p * o:(p + 1) * o, p * i:(p + 1) * i].set(w)
        return out

    # layer 1: hidden rows ordered [shape img0..imgP-1 | appear img0..imgP-1]
    w1_all = jnp.concatenate([block_diag(w1s), block_diag(w1a)], axis=0)
    b1_all = jnp.concatenate([jnp.tile(b1s, (P, 1)), jnp.tile(b1a, (P, 1))], axis=0)

    # layer 2: output rows ordered so the kernel gets
    #   [mu_x (P*C) | log_var_x (P*C) | mu_m (P*C) | log_var_m (P*C)]
    # with each image's rows reading only its own hidden block.
    row_blocks, bias_blocks = [], []
    parts = [(w2s[:C], b2s[:C], 0), (w2s[C:], b2s[C:], 0),
             (w2a[:C], b2a[:C], 1), (w2a[C:], b2a[C:], 1)]
    for w_part, b_part, head in parts:
        for p in range(P):
            row = jnp.zeros((C, 2 * P * hidden), w_part.dtype)
            c0 = (head * P + p) * hidden
            row = row.at[:, c0:c0 + hidden].set(w_part)
            row_blocks.append(row)
            bias_blocks.append(b_part)
    w2_all = jnp.concatenate(row_blocks, axis=0)              # (4*P*C, 2*P*hidden)
    b2_all = jnp.concatenate(bias_blocks, axis=0)              # (4*P*C, 1)
    return w1_all, b1_all, w2_all, b2_all


# --------------------------------------------------------------------------
# Wrapper
# --------------------------------------------------------------------------
def bayes_dec_forward(samples, params, eps_x, eps_m, eps_n, training=True):
    N, C, H, W = samples.shape
    HW = H * W
    hidden = params['shape_w1'].shape[0]
    f32, bf16 = jnp.float32, jnp.bfloat16

    # Pack 2 images per grid step when possible (fills the 8 f32 sublanes with
    # C=4).  NOTE: for small even batches this halves the parallel grid; keep
    # N >= 2*P if megacore balance on v7x matters.
    P = 2 if N % 2 == 0 else 1
    NB = N // P
    PC = P * C

    def pack(a):
        return a.astype(f32).reshape(NB, PC, HW)              # free bitcast reshape

    s_p = pack(samples)
    ex_p, em_p, en_p = pack(eps_x), pack(eps_m), pack(eps_n)

    w1_all, b1_all, w2_all, b2_all = _pack_params(params, P, C, hidden)
    gnw = jnp.tile(params['gn_weight'], (P, 1))
    gnb = jnp.tile(params['gn_bias'], (P, 1))

    # Row-edge masks for the left/right stencil neighbours (precomputed here so
    # the kernel never does a per-element integer mod).
    idx = np.arange(HW)
    masks = jnp.asarray(np.stack([(idx % W != 0).astype(np.float32),
                                  (idx % W != W - 1).astype(np.float32)]))  # (2, HW)

    img_spec = pl.BlockSpec((1, PC, HW), lambda i: (i, 0, 0))
    pch_spec = pl.BlockSpec((1, P, HW), lambda i: (i, 0, 0))
    nrm_spec = pl.BlockSpec((1, 1, 128), lambda i: (i, 0, 0))

    def cspec(shape):
        return pl.BlockSpec(shape, lambda i, _r=len(shape): (0,) * _r)

    in_specs = [img_spec, img_spec, img_spec, img_spec,
                cspec((2, HW)),
                cspec(w1_all.shape), cspec(b1_all.shape),
                cspec(w2_all.shape), cspec(b2_all.shape),
                cspec((PC, 1)), cspec((PC, 1))]

    out_shape = (
        jax.ShapeDtypeStruct((NB, PC, HW), f32),    # pred
        jax.ShapeDtypeStruct((NB, PC, HW), f32),    # kl_y
        jax.ShapeDtypeStruct((NB, P, HW), f32),     # kl_mu_x
        jax.ShapeDtypeStruct((NB, P, HW), f32),     # kl_sigma_x
        jax.ShapeDtypeStruct((NB, PC, HW), f32),    # kl_mu_m
        jax.ShapeDtypeStruct((NB, PC, HW), f32),    # kl_sigma_m
        jax.ShapeDtypeStruct((NB, PC, HW), f32),    # rho
        jax.ShapeDtypeStruct((NB, P, HW), f32),     # upsilon
        jax.ShapeDtypeStruct((NB, 1, 128), f32),    # sum(rho) partial
        jax.ShapeDtypeStruct((NB, PC, HW), bf16),   # x            (visualize)
        jax.ShapeDtypeStruct((NB, PC, HW), bf16),   # mu_x         (visualize)
        jax.ShapeDtypeStruct((NB, PC, HW), bf16),   # sigma_x      (visualize)
        jax.ShapeDtypeStruct((NB, PC, HW), bf16),   # n            (visualize)
        jax.ShapeDtypeStruct((NB, PC, HW), bf16),   # m            (visualize)
    )
    out_specs = [img_spec, img_spec, pch_spec, pch_spec, img_spec, img_spec,
                 img_spec, pch_spec, nrm_spec,
                 img_spec, img_spec, img_spec, img_spec, img_spec]

    # Explicit VMEM budget sized against the per-step block (double-buffered
    # pipeline blocks + live temporaries), clamped to fit every generation.
    full_bytes = PC * HW * 4
    block_bytes = (4 * full_bytes                  # samples + 3 eps inputs
                   + 5 * full_bytes                # f32 full outputs
                   + 5 * (full_bytes // 2)         # bf16 full outputs
                   + 3 * P * HW * 4 + 4096)        # small outputs / consts
    temp_bytes = 22 * full_bytes + (2 * P * hidden) * HW * 4
    vmem_limit = int(min(max(2 * block_bytes + temp_bytes, 32 * 2 ** 20),
                         64 * 2 ** 20))

    kernel = functools.partial(
        _bayes_fused_kernel, P=P, C=C, H=H, W=W, mu_0=MU_0, sigma_0=SIGMA_0,
        gamma_rho=GAMMA_RHO, phi_rho=PHI_RHO, gamma_upsilon=GAMMA_UPSILON,
        phi_upsilon=PHI_UPSILON, training=training)

    (pred, kl_y, kl_mu_x, kl_sigma_x, kl_mu_m, kl_sigma_m, rho, ups, norm_part,
     x_v, mux_v, sigx_v, n_v, m_v) = pl.pallas_call(
        kernel,
        out_shape=out_shape,
        grid=(NB,),
        in_specs=in_specs,
        out_specs=out_specs,
        compiler_params=pltpu.CompilerParams(
            dimension_semantics=("parallel",),
            vmem_limit_bytes=vmem_limit),
    )(s_p, ex_p, em_p, en_p, masks, w1_all, b1_all, w2_all, b2_all, gnw, gnb)

    def full4(a):   # (NB, P*C, HW) -> (N, C, H, W)
        return a.reshape(N, C, H, W)

    def one4(a):    # (NB, P, HW) -> (N, 1, H, W)
        return a.reshape(N, 1, H, W)

    rho4 = full4(rho)
    # 1/sqrt(rho) is visualization-only: recomputed lazily from rho instead of
    # being emitted as another full HBM stream from the kernel.
    inv_sqrt_rho = jax.lax.rsqrt(rho4).astype(bf16)

    visualize = {
        'shape': jnp.concatenate([full4(x_v), full4(mux_v), full4(sigx_v)], axis=0),
        'appearance': jnp.concatenate([full4(n_v), full4(m_v), inv_sqrt_rho], axis=0),
        'shape_boundary': one4(ups),
    }
    out = {
        'pred': full4(pred),
        'kl_y': full4(kl_y),
        'kl_mu_x': kl_mu_x.reshape(N, H, W),
        'kl_sigma_x': kl_sigma_x.reshape(N, H, W),
        'kl_mu_m': full4(kl_mu_m),
        'kl_sigma_m': full4(kl_sigma_m),
        'normalization': jnp.sum(norm_part[:, 0, 0]),
        'rho': rho4,
        'upsilon': one4(ups),
        'visualize': visualize,
        'deep_feature': None,   # RETURN_FEATURE = False
    }
    return out


# --------------------------------------------------------------------------
# Deterministic parameter init (weights stored (out, in) for out = W @ x_(C,HW))
# --------------------------------------------------------------------------
def init_params(key, C, hidden):
    ks = jax.random.split(key, 4)

    def dense(k, fan_out, fan_in):
        return 0.1 * jax.random.normal(k, (fan_out, fan_in), jnp.float32)

    return {
        'shape_w1': dense(ks[0], hidden, C),
        'shape_b1': jnp.zeros((hidden, 1), jnp.float32),
        'shape_w2': dense(ks[1], 2 * C, hidden),
        'shape_b2': jnp.zeros((2 * C, 1), jnp.float32),
        'app_w1': dense(ks[2], hidden, C),
        'app_b1': jnp.zeros((hidden, 1), jnp.float32),
        'app_w2': dense(ks[3], 2 * C, hidden),
        'app_b2': jnp.zeros((2 * C, 1), jnp.float32),
        # GroupNorm affine params (PyTorch default init: weight=1, bias=0)
        'gn_weight': jnp.ones((C, 1), jnp.float32),
        'gn_bias': jnp.zeros((C, 1), jnp.float32),
    }


# --------------------------------------------------------------------------
# Pure-JAX reference (independent formulation) for correctness checking.
# --------------------------------------------------------------------------
def reference_forward(samples, params, eps_x, eps_m, eps_n, training=True):
    N, C, H, W = samples.shape
    s = samples.reshape(N, C, H * W).astype(jnp.float32)

    def head(w1, b1, w2, b2):
        h = jnp.maximum(jnp.einsum('oc,nck->nok', w1, s) + b1[None], 0.0)
        return jnp.einsum('oh,nhk->nok', w2, h) + b2[None]

    feat_s = head(params['shape_w1'], params['shape_b1'],
                  params['shape_w2'], params['shape_b2'])
    feat_a = head(params['app_w1'], params['app_b1'],
                  params['app_w2'], params['app_b2'])
    mu_x = feat_s[:, :C].reshape(N, C, H, W)
    log_var_x = jnp.clip(feat_s[:, C:], -20.0, 0.0).reshape(N, C, H, W)
    mu_m = feat_a[:, :C].reshape(N, C, H, W)
    log_var_m = jnp.clip(feat_a[:, C:], -20.0, 0.0).reshape(N, C, H, W)

    sigma_x = jnp.exp(0.5 * log_var_x)
    x = eps_x * sigma_x + mu_x
    m = eps_m * jnp.exp(0.5 * log_var_m) + mu_m
    residual = samples - (x + m)
    rho = (2.0 * GAMMA_RHO + 1.0) / (residual * residual + 2.0 * PHI_RHO)
    n = eps_n * jax.lax.rsqrt(rho) + m

    pad = jnp.pad(mu_x, ((0, 0), (0, 0), (1, 1), (1, 1)))
    diff_x = mu_x - 0.25 * (pad[:, :, 0:H, 1:W + 1] + pad[:, :, 2:H + 2, 1:W + 1]
                            + pad[:, :, 1:H + 1, 0:W] + pad[:, :, 1:H + 1, 2:W + 2])
    alpha = 2.0 * GAMMA_UPSILON + C
    beta = jnp.sum(diff_x * diff_x + 2.0 * jnp.exp(log_var_x),
                   axis=1, keepdims=True) + 2.0 * PHI_UPSILON
    ups = alpha / beta

    kl_y = residual * rho * residual
    kl_mu_x = jnp.sum(diff_x * diff_x * ups, axis=1)
    kl_sigma_x = jnp.sum(2.0 * jnp.exp(log_var_x) * ups - log_var_x, axis=1)
    kl_mu_m = SIGMA_0 * (mu_m - MU_0) * (mu_m - MU_0)
    kl_sigma_m = SIGMA_0 * jnp.exp(log_var_m) - log_var_m

    pred_in = x if training else mu_x
    mean = pred_in.mean(axis=(2, 3), keepdims=True)
    var = ((pred_in - mean) ** 2).mean(axis=(2, 3), keepdims=True)
    gw = params['gn_weight'].reshape(1, C, 1, 1)
    gb = params['gn_bias'].reshape(1, C, 1, 1)
    pred = (pred_in - mean) * jax.lax.rsqrt(var + 1e-5) * gw + gb

    return {'pred': pred, 'kl_y': kl_y, 'kl_mu_x': kl_mu_x,
            'kl_sigma_x': kl_sigma_x, 'kl_mu_m': kl_mu_m,
            'kl_sigma_m': kl_sigma_m, 'rho': rho, 'upsilon': ups,
            'normalization': jnp.sum(rho)}


if __name__ == "__main__":
    key = jax.random.PRNGKey(0)
    pkey, xkey, k1, k2, k3 = jax.random.split(key, 5)
    N, C, H, W = 2, IN_CHANNEL, 16, 16

    params = init_params(pkey, C, HIDDEN)
    samples = jax.random.normal(xkey, (N, C, H, W), jnp.float32)
    eps_x = jax.random.normal(k1, (N, C, H, W), jnp.float32)
    eps_m = jax.random.normal(k2, (N, C, H, W), jnp.float32)
    eps_n = jax.random.normal(k3, (N, C, H, W), jnp.float32)

    out = bayes_dec_forward(samples, params, eps_x, eps_m, eps_n, training=True)
    out = jax.block_until_ready(out)

    ref = reference_forward(samples, params, eps_x, eps_m, eps_n, training=True)
    ref = jax.block_until_ready(ref)

    for name in ['pred', 'kl_y', 'kl_mu_x', 'kl_sigma_x', 'kl_mu_m',
                 'kl_sigma_m', 'rho', 'upsilon']:
        np.testing.assert_allclose(np.asarray(out[name], dtype=np.float32),
                                   np.asarray(ref[name], dtype=np.float32),
                                   rtol=5e-3, atol=1e-3, err_msg=name)
    np.testing.assert_allclose(float(out['normalization']),
                               float(ref['normalization']), rtol=5e-3)
    assert out['visualize']['shape'].shape == (3 * N, C, H, W)
    assert out['visualize']['appearance'].shape == (3 * N, C, H, W)
    assert out['visualize']['shape_boundary'].shape == (N, 1, H, W)
    assert out['deep_feature'] is None

    print("KERNEL_OK")
</pallas_src>

<mosaic_0001>
module attributes {stable_mosaic.version = 11 : i64} {
  func.func @_bayes_fused_kernel(%arg0: i32, %arg1: memref<1x8x256xf32, #tpu.memory_space<vmem>>, %arg2: memref<1x8x256xf32, #tpu.memory_space<vmem>>, %arg3: memref<1x8x256xf32, #tpu.memory_space<vmem>>, %arg4: memref<1x8x256xf32, #tpu.memory_space<vmem>>, %arg5: memref<2x256xf32, #tpu.memory_space<vmem>>, %arg6: memref<128x8xf32, #tpu.memory_space<vmem>>, %arg7: memref<128x1xf32, #tpu.memory_space<vmem>>, %arg8: memref<32x128xf32, #tpu.memory_space<vmem>>, %arg9: memref<32x1xf32, #tpu.memory_space<vmem>>, %arg10: memref<8x1xf32, #tpu.memory_space<vmem>>, %arg11: memref<8x1xf32, #tpu.memory_space<vmem>>, %arg12: memref<1x8x256xf32, #tpu.memory_space<vmem>>, %arg13: memref<1x8x256xf32, #tpu.memory_space<vmem>>, %arg14: memref<1x2x256xf32, #tpu.memory_space<vmem>>, %arg15: memref<1x2x256xf32, #tpu.memory_space<vmem>>, %arg16: memref<1x8x256xf32, #tpu.memory_space<vmem>>, %arg17: memref<1x8x256xf32, #tpu.memory_space<vmem>>, %arg18: memref<1x8x256xf32, #tpu.memory_space<vmem>>, %arg19: memref<1x2x256xf32, #tpu.memory_space<vmem>>, %arg20: memref<1x1x128xf32, #tpu.memory_space<vmem>>, %arg21: memref<1x8x256xbf16, #tpu.memory_space<vmem>>, %arg22: memref<1x8x256xbf16, #tpu.memory_space<vmem>>, %arg23: memref<1x8x256xbf16, #tpu.memory_space<vmem>>, %arg24: memref<1x8x256xbf16, #tpu.memory_space<vmem>>, %arg25: memref<1x8x256xbf16, #tpu.memory_space<vmem>>) attributes {dimension_semantics = [#tpu.dimension_semantics<parallel>], iteration_bounds = array<i64: 1>, scalar_prefetch = 0 : i64, scratch_operands = 0 : i64, tpu.core_type = #tpu.core_type<tc>, window_params = [{transform_indices = @transform_0, window_bounds = array<i64: 1, 8, 256>}, {transform_indices = @transform_1, window_bounds = array<i64: 1, 8, 256>}, {transform_indices = @transform_2, window_bounds = array<i64: 1, 8, 256>}, {transform_indices = @transform_3, window_bounds = array<i64: 1, 8, 256>}, {pipeline_mode = #tpu.pipeline_mode<synchronous>, transform_indices = @transform_4, window_bounds = array<i64: 2, 256>}, {pipeline_mode = #tpu.pipeline_mode<synchronous>, transform_indices = @transform_5, window_bounds = array<i64: 128, 8>}, {pipeline_mode = #tpu.pipeline_mode<synchronous>, transform_indices = @transform_6, window_bounds = array<i64: 128, 1>}, {pipeline_mode = #tpu.pipeline_mode<synchronous>, transform_indices = @transform_7, window_bounds = array<i64: 32, 128>}, {pipeline_mode = #tpu.pipeline_mode<synchronous>, transform_indices = @transform_8, window_bounds = array<i64: 32, 1>}, {pipeline_mode = #tpu.pipeline_mode<synchronous>, transform_indices = @transform_9, window_bounds = array<i64: 8, 1>}, {pipeline_mode = #tpu.pipeline_mode<synchronous>, transform_indices = @transform_10, window_bounds = array<i64: 8, 1>}, {transform_indices = @transform_11, window_bounds = array<i64: 1, 8, 256>}, {transform_indices = @transform_12, window_bounds = array<i64: 1, 8, 256>}, {transform_indices = @transform_13, window_bounds = array<i64: 1, 2, 256>}, {transform_indices = @transform_14, window_bounds = array<i64: 1, 2, 256>}, {transform_indices = @transform_15, window_bounds = array<i64: 1, 8, 256>}, {transform_indices = @transform_16, window_bounds = array<i64: 1, 8, 256>}, {transform_indices = @transform_17, window_bounds = array<i64: 1, 8, 256>}, {transform_indices = @transform_18, window_bounds = array<i64: 1, 2, 256>}, {transform_indices = @transform_19, window_bounds = array<i64: 1, 1, 128>}, {transform_indices = @transform_20, window_bounds = array<i64: 1, 8, 256>}, {transform_indices = @transform_21, window_bounds = array<i64: 1, 8, 256>}, {transform_indices = @transform_22, window_bounds = array<i64: 1, 8, 256>}, {transform_indices = @transform_23, window_bounds = array<i64: 1, 8, 256>}, {transform_indices = @transform_24, window_bounds = array<i64: 1, 8, 256>}]} {
    %c0 = arith.constant 0 : index
    %c0_0 = arith.constant 0 : index
    %c0_1 = arith.constant 0 : index
    %0 = vector.load %arg1[%c0, %c0_0, %c0_1] : memref<1x8x256xf32, #tpu.memory_space<vmem>>, vector<1x8x256xf32>
    %1 = vector.shape_cast %0 : vector<1x8x256xf32> to vector<8x256xf32>
    %c0_2 = arith.constant 0 : index
    %c0_3 = arith.constant 0 : index
    %2 = vector.load %arg6[%c0_2, %c0_3] : memref<128x8xf32, #tpu.memory_space<vmem>>, vector<128x8xf32>
    %cst = arith.constant dense<0.000000e+00> : vector<128x256xf32>
    %3 = tpu.matmul %2, %1, %cst {dimension_numbers = #tpu.dot_dimension_numbers<[1], [0], [0], [1], [0, 0, 1, 1], [], []>} : vector<128x8xf32>, vector<8x256xf32>, vector<128x256xf32> -> vector<128x256xf32>
    %c0_4 = arith.constant 0 : index
    %c0_5 = arith.constant 0 : index
    %4 = vector.load %arg7[%c0_4, %c0_5] : memref<128x1xf32, #tpu.memory_space<vmem>>, vector<128x1xf32>
    %5 = vector.broadcast %4 : vector<128x1xf32> to vector<128x256xf32>
    %6 = arith.addf %3, %5 : vector<128x256xf32>
    %cst_6 = arith.constant 0.000000e+00 : f32
    %7 = vector.broadcast %cst_6 : f32 to vector<128x256xf32>
    %8 = arith.maximumf %6, %7 : vector<128x256xf32>
    %c0_7 = arith.constant 0 : index
    %c0_8 = arith.constant 0 : index
    %9 = vector.load %arg8[%c0_7, %c0_8] : memref<32x128xf32, #tpu.memory_space<vmem>>, vector<32x128xf32>
    %cst_9 = arith.constant dense<0.000000e+00> : vector<32x256xf32>
    %10 = tpu.matmul %9, %8, %cst_9 {dimension_numbers = #tpu.dot_dimension_numbers<[1], [0], [0], [1], [0, 0, 1, 1], [], []>} : vector<32x128xf32>, vector<128x256xf32>, vector<32x256xf32> -> vector<32x256xf32>
    %c0_10 = arith.constant 0 : index
    %c0_11 = arith.constant 0 : index
    %11 = vector.load %arg9[%c0_10, %c0_11] : memref<32x1xf32, #tpu.memory_space<vmem>>, vector<32x1xf32>
    %12 = vector.broadcast %11 : vector<32x1xf32> to vector<32x256xf32>
    %13 = arith.addf %10, %12 : vector<32x256xf32>
    %14 = vector.extract_strided_slice %13 {offsets = [0, 0], sizes = [8, 256], strides = [1, 1]} : vector<32x256xf32> to vector<8x256xf32>
    %15 = vector.extract_strided_slice %13 {offsets = [8, 0], sizes = [8, 256], strides = [1, 1]} : vector<32x256xf32> to vector<8x256xf32>
    %cst_12 = arith.constant -2.000000e+01 : f32
    %cst_13 = arith.constant 0.000000e+00 : f32
    %16 = vector.broadcast %cst_12 : f32 to vector<8x256xf32>
    %17 = arith.maximumf %16, %15 : vector<8x256xf32>
    %18 = vector.broadcast %cst_13 : f32 to vector<8x256xf32>
    %19 = arith.minimumf %18, %17 : vector<8x256xf32>
    %20 = vector.extract_strided_slice %13 {offsets = [16, 0], sizes = [8, 256], strides = [1, 1]} : vector<32x256xf32> to vector<8x256xf32>
    %21 = vector.extract_strided_slice %13 {offsets = [24, 0], sizes = [8, 256], strides = [1, 1]} : vector<32x256xf32> to vector<8x256xf32>
    %cst_14 = arith.constant -2.000000e+01 : f32
    %cst_15 = arith.constant 0.000000e+00 : f32
    %22 = vector.broadcast %cst_14 : f32 to vector<8x256xf32>
    %23 = arith.maximumf %22, %21 : vector<8x256xf32>
    %24 = vector.broadcast %cst_15 : f32 to vector<8x256xf32>
    %25 = arith.minimumf %24, %23 : vector<8x256xf32>
    %cst_16 = arith.constant 5.000000e-01 : f32
    %26 = vector.broadcast %cst_16 : f32 to vector<8x256xf32>
    %27 = arith.mulf %26, %19 : vector<8x256xf32>
    %28 = math.exp %27 : vector<8x256xf32>
    %c0_17 = arith.constant 0 : index
    %c0_18 = arith.constant 0 : index
    %c0_19 = arith.constant 0 : index
    %29 = vector.load %arg2[%c0_17, %c0_18, %c0_19] : memref<1x8x256xf32, #tpu.memory_space<vmem>>, vector<1x8x256xf32>
    %30 = vector.shape_cast %29 : vector<1x8x256xf32> to vector<8x256xf32>
    %31 = arith.mulf %30, %28 : vector<8x256xf32>
    %32 = arith.addf %31, %14 : vector<8x256xf32>
    %c0_20 = arith.constant 0 : index
    %c0_21 = arith.constant 0 : index
    %c0_22 = arith.constant 0 : index
    %33 = vector.load %arg3[%c0_20, %c0_21, %c0_22] : memref<1x8x256xf32, #tpu.memory_space<vmem>>, vector<1x8x256xf32>
    %34 = vector.shape_cast %33 : vector<1x8x256xf32> to vector<8x256xf32>
    %cst_23 = arith.constant 5.000000e-01 : f32
    %35 = vector.broadcast %cst_23 : f32 to vector<8x256xf32>
    %36 = arith.mulf %35, %25 : vector<8x256xf32>
    %37 = math.exp %36 : vector<8x256xf32>
    %38 = arith.mulf %34, %37 : vector<8x256xf32>
    %39 = arith.addf %38, %20 : vector<8x256xf32>
    %40 = arith.addf %32, %39 : vector<8x256xf32>
    %41 = arith.subf %1, %40 : vector<8x256xf32>
    %42 = arith.mulf %41, %41 : vector<8x256xf32>
    %cst_24 = arith.constant 2.000000e-04 : f32
    %43 = vector.broadcast %cst_24 : f32 to vector<8x256xf32>
    %44 = arith.addf %42, %43 : vector<8x256xf32>
    %cst_25 = arith.constant 3.000000e+00 : f32
    %45 = vector.broadcast %cst_25 : f32 to vector<8x256xf32>
    %46 = arith.divf %45, %44 : vector<8x256xf32>
    %c0_26 = arith.constant 0 : index
    %c0_27 = arith.constant 0 : index
    %c0_28 = arith.constant 0 : index
    %47 = vector.load %arg4[%c0_26, %c0_27, %c0_28] : memref<1x8x256xf32, #tpu.memory_space<vmem>>, vector<1x8x256xf32>
    %48 = vector.shape_cast %47 : vector<1x8x256xf32> to vector<8x256xf32>
    %49 = math.rsqrt %46 : vector<8x256xf32>
    %50 = arith.mulf %48, %49 : vector<8x256xf32>
    %51 = arith.addf %50, %39 : vector<8x256xf32>
    %cst_29 = arith.constant 0.000000e+00 : f32
    %52 = vector.broadcast %cst_29 : f32 to vector<8x16xf32>
    %53 = vector.extract_strided_slice %14 {offsets = [0, 0], sizes = [8, 240], strides = [1, 1]} : vector<8x256xf32> to vector<8x240xf32>
    %54 = tpu.concatenate %52, %53 in 1 : vector<8x16xf32>, vector<8x240xf32> -> vector<8x256xf32>
    %55 = vector.extract_strided_slice %14 {offsets = [0, 16], sizes = [8, 240], strides = [1, 1]} : vector<8x256xf32> to vector<8x240xf32>
    %cst_30 = arith.constant 0.000000e+00 : f32
    %56 = vector.broadcast %cst_30 : f32 to vector<8x16xf32>
    %57 = tpu.concatenate %55, %56 in 1 : vector<8x240xf32>, vector<8x16xf32> -> vector<8x256xf32>
    %c0_31 = arith.constant 0 : index
    %c0_32 = arith.constant 0 : index
    %58 = vector.load %arg5[%c0_31, %c0_32] : memref<2x256xf32, #tpu.memory_space<vmem>>, vector<1x256xf32>
    %cst_33 = arith.constant 0.000000e+00 : f32
    %59 = vector.broadcast %cst_33 : f32 to vector<8x1xf32>
    %60 = vector.extract_strided_slice %14 {offsets = [0, 0], sizes = [8, 255], strides = [1, 1]} : vector<8x256xf32> to vector<8x255xf32>
    %61 = tpu.concatenate %59, %60 in 1 : vector<8x1xf32>, vector<8x255xf32> -> vector<8x256xf32>
    %62 = vector.broadcast %58 : vector<1x256xf32> to vector<8x256xf32>
    %63 = arith.mulf %62, %61 : vector<8x256xf32>
    %c1 = arith.constant 1 : index
    %c0_34 = arith.constant 0 : index
    %64 = vector.load %arg5[%c1, %c0_34] : memref<2x256xf32, #tpu.memory_space<vmem>>, vector<1x256xf32>
    %65 = vector.extract_strided_slice %14 {offsets = [0, 1], sizes = [8, 255], strides = [1, 1]} : vector<8x256xf32> to vector<8x255xf32>
    %cst_35 = arith.constant 0.000000e+00 : f32
    %66 = vector.broadcast %cst_35 : f32 to vector<8x1xf32>
    %67 = tpu.concatenate %65, %66 in 1 : vector<8x255xf32>, vector<8x1xf32> -> vector<8x256xf32>
    %68 = vector.broadcast %64 : vector<1x256xf32> to vector<8x256xf32>
    %69 = arith.mulf %68, %67 : vector<8x256xf32>
    %70 = arith.addf %54, %57 : vector<8x256xf32>
    %71 = arith.addf %70, %63 : vector<8x256xf32>
    %72 = arith.addf %71, %69 : vector<8x256xf32>
    %cst_36 = arith.constant 2.500000e-01 : f32
    %73 = vector.broadcast %cst_36 : f32 to vector<8x256xf32>
    %74 = arith.mulf %73, %72 : vector<8x256xf32>
    %75 = arith.subf %14, %74 : vector<8x256xf32>
    %76 = arith.mulf %75, %75 : vector<8x256xf32>
    %77 = math.exp %19 : vector<8x256xf32>
    %cst_37 = arith.constant 2.000000e+00 : f32
    %78 = vector.broadcast %cst_37 : f32 to vector<8x256xf32>
    %79 = arith.mulf %78, %77 : vector<8x256xf32>
    %80 = vector.extract_strided_slice %76 {offsets = [0, 0], sizes = [4, 256], strides = [1, 1]} : vector<8x256xf32> to vector<4x256xf32>
    %cst_38 = arith.constant dense<0.000000e+00> : vector<256xf32>
    %81 = vector.multi_reduction <add>, %80, %cst_38 [0] : vector<4x256xf32> to vector<256xf32>
    %82 = vector.shape_cast %81 : vector<256xf32> to vector<1x256xf32>
    %83 = vector.extract_strided_slice %79 {offsets = [0, 0], sizes = [4, 256], strides = [1, 1]} : vector<8x256xf32> to vector<4x256xf32>
    %cst_39 = arith.constant dense<0.000000e+00> : vector<256xf32>
    %84 = vector.multi_reduction <add>, %83, %cst_39 [0] : vector<4x256xf32> to vector<256xf32>
    %85 = vector.shape_cast %84 : vector<256xf32> to vector<1x256xf32>
    %86 = vector.extract_strided_slice %19 {offsets = [0, 0], sizes = [4, 256], strides = [1, 1]} : vector<8x256xf32> to vector<4x256xf32>
    %cst_40 = arith.constant dense<0.000000e+00> : vector<256xf32>
    %87 = vector.multi_reduction <add>, %86, %cst_40 [0] : vector<4x256xf32> to vector<256xf32>
    %88 = vector.shape_cast %87 : vector<256xf32> to vector<1x256xf32>
    %89 = arith.addf %82, %85 : vector<1x256xf32>
    %cst_41 = arith.constant 2.000000e-04 : f32
    %90 = vector.broadcast %cst_41 : f32 to vector<1x256xf32>
    %91 = arith.addf %89, %90 : vector<1x256xf32>
    %cst_42 = arith.constant 6.000000e+00 : f32
    %92 = vector.broadcast %cst_42 : f32 to vector<1x256xf32>
    %93 = arith.divf %92, %91 : vector<1x256xf32>
    %94 = arith.mulf %82, %93 : vector<1x256xf32>
    %95 = arith.mulf %85, %93 : vector<1x256xf32>
    %96 = arith.subf %95, %88 : vector<1x256xf32>
    %97 = vector.extract_strided_slice %76 {offsets = [4, 0], sizes = [4, 256], strides = [1, 1]} : vector<8x256xf32> to vector<4x256xf32>
    %cst_43 = arith.constant dense<0.000000e+00> : vector<256xf32>
    %98 = vector.multi_reduction <add>, %97, %cst_43 [0] : vector<4x256xf32> to vector<256xf32>
    %99 = vector.shape_cast %98 : vector<256xf32> to vector<1x256xf32>
    %100 = vector.extract_strided_slice %79 {offsets = [4, 0], sizes = [4, 256], strides = [1, 1]} : vector<8x256xf32> to vector<4x256xf32>
    %cst_44 = arith.constant dense<0.000000e+00> : vector<256xf32>
    %101 = vector.multi_reduction <add>, %100, %cst_44 [0] : vector<4x256xf32> to vector<256xf32>
    %102 = vector.shape_cast %101 : vector<256xf32> to vector<1x256xf32>
    %103 = vector.extract_strided_slice %19 {offsets = [4, 0], sizes = [4, 256], strides = [1, 1]} : vector<8x256xf32> to vector<4x256xf32>
    %cst_45 = arith.constant dense<0.000000e+00> : vector<256xf32>
    %104 = vector.multi_reduction <add>, %103, %cst_45 [0] : vector<4x256xf32> to vector<256xf32>
    %105 = vector.shape_cast %104 : vector<256xf32> to vector<1x256xf32>
    %106 = arith.addf %99, %102 : vector<1x256xf32>
    %cst_46 = arith.constant 2.000000e-04 : f32
    %107 = vector.broadcast %cst_46 : f32 to vector<1x256xf32>
    %108 = arith.addf %106, %107 : vector<1x256xf32>
    %cst_47 = arith.constant 6.000000e+00 : f32
    %109 = vector.broadcast %cst_47 : f32 to vector<1x256xf32>
    %110 = arith.divf %109, %108 : vector<1x256xf32>
    %111 = arith.mulf %99, %110 : vector<1x256xf32>
    %112 = arith.mulf %102, %110 : vector<1x256xf32>
    %113 = arith.subf %112, %105 : vector<1x256xf32>
    %114 = tpu.concatenate %93, %110 in 0 : vector<1x256xf32>, vector<1x256xf32> -> vector<2x256xf32>
    %115 = tpu.concatenate %94, %111 in 0 : vector<1x256xf32>, vector<1x256xf32> -> vector<2x256xf32>
    %116 = tpu.concatenate %96, %113 in 0 : vector<1x256xf32>, vector<1x256xf32> -> vector<2x256xf32>
    %117 = arith.mulf %41, %46 : vector<8x256xf32>
    %118 = arith.mulf %117, %41 : vector<8x256xf32>
    %cst_48 = arith.constant 0.000000e+00 : f32
    %119 = vector.broadcast %cst_48 : f32 to vector<8x256xf32>
    %120 = arith.subf %20, %119 : vector<8x256xf32>
    %cst_49 = arith.constant 1.000000e+00 : f32
    %121 = vector.broadcast %cst_49 : f32 to vector<8x256xf32>
    %122 = arith.mulf %121, %120 : vector<8x256xf32>
    %cst_50 = arith.constant 0.000000e+00 : f32
    %123 = vector.broadcast %cst_50 : f32 to vector<8x256xf32>
    %124 = arith.subf %20, %123 : vector<8x256xf32>
    %125 = arith.mulf %122, %124 : vector<8x256xf32>
    %126 = math.exp %25 : vector<8x256xf32>
    %cst_51 = arith.constant 1.000000e+00 : f32
    %127 = vector.broadcast %cst_51 : f32 to vector<8x256xf32>
    %128 = arith.mulf %127, %126 : vector<8x256xf32>
    %129 = arith.subf %128, %25 : vector<8x256xf32>
    %cst_52 = arith.constant dense<0.000000e+00> : vector<8xf32>
    %130 = vector.multi_reduction <add>, %32, %cst_52 [1] : vector<8x256xf32> to vector<8xf32>
    %131 = vector.shape_cast %130 : vector<8xf32> to vector<8x1xf32>
    %cst_53 = arith.constant 3.906250e-03 : f32
    %132 = vector.broadcast %cst_53 : f32 to vector<8x1xf32>
    %133 = arith.mulf %131, %132 : vector<8x1xf32>
    %134 = vector.broadcast %133 : vector<8x1xf32> to vector<8x256xf32>
    %135 = arith.subf %32, %134 : vector<8x256xf32>
    %136 = arith.mulf %135, %135 : vector<8x256xf32>
    %cst_54 = arith.constant dense<0.000000e+00> : vector<8xf32>
    %137 = vector.multi_reduction <add>, %136, %cst_54 [1] : vector<8x256xf32> to vector<8xf32>
    %138 = vector.shape_cast %137 : vector<8xf32> to vector<8x1xf32>
    %cst_55 = arith.constant 3.906250e-03 : f32
    %139 = vector.broadcast %cst_55 : f32 to vector<8x1xf32>
    %140 = arith.mulf %138, %139 : vector<8x1xf32>
    %cst_56 = arith.constant 9.99999974E-6 : f32
    %141 = vector.broadcast %cst_56 : f32 to vector<8x1xf32>
    %142 = arith.addf %140, %141 : vector<8x1xf32>
    %143 = math.rsqrt %142 : vector<8x1xf32>
    %144 = vector.broadcast %143 : vector<8x1xf32> to vector<8x256xf32>
    %145 = arith.mulf %135, %144 : vector<8x256xf32>
    %c0_57 = arith.constant 0 : index
    %c0_58 = arith.constant 0 : index
    %146 = vector.load %arg10[%c0_57, %c0_58] : memref<8x1xf32, #tpu.memory_space<vmem>>, vector<8x1xf32>
    %147 = vector.broadcast %146 : vector<8x1xf32> to vector<8x256xf32>
    %148 = arith.mulf %145, %147 : vector<8x256xf32>
    %c0_59 = arith.constant 0 : index
    %c0_60 = arith.constant 0 : index
    %149 = vector.load %arg11[%c0_59, %c0_60] : memref<8x1xf32, #tpu.memory_space<vmem>>, vector<8x1xf32>
    %150 = vector.broadcast %149 : vector<8x1xf32> to vector<8x256xf32>
    %151 = arith.addf %148, %150 : vector<8x256xf32>
    %cst_61 = arith.constant dense<0.000000e+00> : vector<8xf32>
    %152 = vector.multi_reduction <add>, %46, %cst_61 [1] : vector<8x256xf32> to vector<8xf32>
    %153 = vector.shape_cast %152 : vector<8xf32> to vector<8x1xf32>
    %cst_62 = arith.constant dense<0.000000e+00> : vector<1xf32>
    %154 = vector.multi_reduction <add>, %153, %cst_62 [0] : vector<8x1xf32> to vector<1xf32>
    %155 = vector.shape_cast %154 : vector<1xf32> to vector<1x1xf32>
    %156 = vector.shape_cast %155 : vector<1x1xf32> to vector<1x1xf32>
    %157 = vector.broadcast %156 : vector<1x1xf32> to vector<1x128xf32>
    %c0_63 = arith.constant 0 : index
    %c0_64 = arith.constant 0 : index
    %c0_65 = arith.constant 0 : index
    %158 = vector.load %arg20[%c0_63, %c0_64, %c0_65] : memref<1x1x128xf32, #tpu.memory_space<vmem>>, vector<1x1x128xf32>
    %159 = vector.shape_cast %158 : vector<1x1x128xf32> to vector<1x128xf32>
    %160 = vector.shape_cast %157 : vector<1x128xf32> to vector<1x1x128xf32>
    tpu.vector_store %arg20[%c0_63, %c0_64, %c0_65], %160 {strides = array<i32>} : memref<1x1x128xf32, #tpu.memory_space<vmem>>, vector<1x1x128xf32>,
    %c0_66 = arith.constant 0 : index
    %c0_67 = arith.constant 0 : index
    %c0_68 = arith.constant 0 : index
    %161 = vector.load %arg12[%c0_66, %c0_67, %c0_68] : memref<1x8x256xf32, #tpu.memory_space<vmem>>, vector<1x8x256xf32>
    %162 = vector.shape_cast %161 : vector<1x8x256xf32> to vector<8x256xf32>
    %163 = vector.shape_cast %151 : vector<8x256xf32> to vector<1x8x256xf32>
    tpu.vector_store %arg12[%c0_66, %c0_67, %c0_68], %163 {strides = array<i32>} : memref<1x8x256xf32, #tpu.memory_space<vmem>>, vector<1x8x256xf32>,
    %c0_69 = arith.constant 0 : index
    %c0_70 = arith.constant 0 : index
    %c0_71 = arith.constant 0 : index
    %164 = vector.load %arg13[%c0_69, %c0_70, %c0_71] : memref<1x8x256xf32, #tpu.memory_space<vmem>>, vector<1x8x256xf32>
    %165 = vector.shape_cast %164 : vector<1x8x256xf32> to vector<8x256xf32>
    %166 = vector.shape_cast %118 : vector<8x256xf32> to vector<1x8x256xf32>
    tpu.vector_store %arg13[%c0_69, %c0_70, %c0_71], %166 {strides = array<i32>} : memref<1x8x256xf32, #tpu.memory_space<vmem>>, vector<1x8x256xf32>,
    %c0_72 = arith.constant 0 : index
    %c0_73 = arith.constant 0 : index
    %c0_74 = arith.constant 0 : index
    %167 = vector.load %arg14[%c0_72, %c0_73, %c0_74] : memref<1x2x256xf32, #tpu.memory_space<vmem>>, vector<1x2x256xf32>
    %168 = vector.shape_cast %167 : vector<1x2x256xf32> to vector<2x256xf32>
    %169 = vector.shape_cast %115 : vector<2x256xf32> to vector<1x2x256xf32>
    tpu.vector_store %arg14[%c0_72, %c0_73, %c0_74], %169 {strides = array<i32>} : memref<1x2x256xf32, #tpu.memory_space<vmem>>, vector<1x2x256xf32>,
    %c0_75 = arith.constant 0 : index
    %c0_76 = arith.constant 0 : index
    %c0_77 = arith.constant 0 : index
    %170 = vector.load %arg15[%c0_75, %c0_76, %c0_77] : memref<1x2x256xf32, #tpu.memory_space<vmem>>, vector<1x2x256xf32>
    %171 = vector.shape_cast %170 : vector<1x2x256xf32> to vector<2x256xf32>
    %172 = vector.shape_cast %116 : vector<2x256xf32> to vector<1x2x256xf32>
    tpu.vector_store %arg15[%c0_75, %c0_76, %c0_77], %172 {strides = array<i32>} : memref<1x2x256xf32, #tpu.memory_space<vmem>>, vector<1x2x256xf32>,
    %c0_78 = arith.constant 0 : index
    %c0_79 = arith.constant 0 : index
    %c0_80 = arith.constant 0 : index
    %173 = vector.load %arg16[%c0_78, %c0_79, %c0_80] : memref<1x8x256xf32, #tpu.memory_space<vmem>>, vector<1x8x256xf32>
    %174 = vector.shape_cast %173 : vector<1x8x256xf32> to vector<8x256xf32>
    %175 = vector.shape_cast %125 : vector<8x256xf32> to vector<1x8x256xf32>
    tpu.vector_store %arg16[%c0_78, %c0_79, %c0_80], %175 {strides = array<i32>} : memref<1x8x256xf32, #tpu.memory_space<vmem>>, vector<1x8x256xf32>,
    %c0_81 = arith.constant 0 : index
    %c0_82 = arith.constant 0 : index
    %c0_83 = arith.constant 0 : index
    %176 = vector.load %arg17[%c0_81, %c0_82, %c0_83] : memref<1x8x256xf32, #tpu.memory_space<vmem>>, vector<1x8x256xf32>
    %177 = vector.shape_cast %176 : vector<1x8x256xf32> to vector<8x256xf32>
    %178 = vector.shape_cast %129 : vector<8x256xf32> to vector<1x8x256xf32>
    tpu.vector_store %arg17[%c0_81, %c0_82, %c0_83], %178 {strides = array<i32>} : memref<1x8x256xf32, #tpu.memory_space<vmem>>, vector<1x8x256xf32>,
    %c0_84 = arith.constant 0 : index
    %c0_85 = arith.constant 0 : index
    %c0_86 = arith.constant 0 : index
    %179 = vector.load %arg18[%c0_84, %c0_85, %c0_86] : memref<1x8x256xf32, #tpu.memory_space<vmem>>, vector<1x8x256xf32>
    %180 = vector.shape_cast %179 : vector<1x8x256xf32> to vector<8x256xf32>
    %181 = vector.shape_cast %46 : vector<8x256xf32> to vector<1x8x256xf32>
    tpu.vector_store %arg18[%c0_84, %c0_85, %c0_86], %181 {strides = array<i32>} : memref<1x8x256xf32, #tpu.memory_space<vmem>>, vector<1x8x256xf32>,
    %c0_87 = arith.constant 0 : index
    %c0_88 = arith.constant 0 : index
    %c0_89 = arith.constant 0 : index
    %182 = vector.load %arg19[%c0_87, %c0_88, %c0_89] : memref<1x2x256xf32, #tpu.memory_space<vmem>>, vector<1x2x256xf32>
    %183 = vector.shape_cast %182 : vector<1x2x256xf32> to vector<2x256xf32>
    %184 = vector.shape_cast %114 : vector<2x256xf32> to vector<1x2x256xf32>
    tpu.vector_store %arg19[%c0_87, %c0_88, %c0_89], %184 {strides = array<i32>} : memref<1x2x256xf32, #tpu.memory_space<vmem>>, vector<1x2x256xf32>,
    %185 = arith.truncf %32 : vector<8x256xf32> to vector<8x256xbf16>
    %c0_90 = arith.constant 0 : index
    %c0_91 = arith.constant 0 : index
    %c0_92 = arith.constant 0 : index
    %186 = vector.load %arg21[%c0_90, %c0_91, %c0_92] : memref<1x8x256xbf16, #tpu.memory_space<vmem>>, vector<1x8x256xbf16>
    %187 = vector.shape_cast %186 : vector<1x8x256xbf16> to vector<8x256xbf16>
    %188 = vector.shape_cast %185 : vector<8x256xbf16> to vector<1x8x256xbf16>
    tpu.vector_store %arg21[%c0_90, %c0_91, %c0_92], %188 {strides = array<i32>} : memref<1x8x256xbf16, #tpu.memory_space<vmem>>, vector<1x8x256xbf16>,
    %189 = arith.truncf %14 : vector<8x256xf32> to vector<8x256xbf16>
    %c0_93 = arith.constant 0 : index
    %c0_94 = arith.constant 0 : index
    %c0_95 = arith.constant 0 : index
    %190 = vector.load %arg22[%c0_93, %c0_94, %c0_95] : memref<1x8x256xbf16, #tpu.memory_space<vmem>>, vector<1x8x256xbf16>
    %191 = vector.shape_cast %190 : vector<1x8x256xbf16> to vector<8x256xbf16>
    %192 = vector.shape_cast %189 : vector<8x256xbf16> to vector<1x8x256xbf16>
    tpu.vector_store %arg22[%c0_93, %c0_94, %c0_95], %192 {strides = array<i32>} : memref<1x8x256xbf16, #tpu.memory_space<vmem>>, vector<1x8x256xbf16>,
    %193 = arith.truncf %28 : vector<8x256xf32> to vector<8x256xbf16>
    %c0_96 = arith.constant 0 : index
    %c0_97 = arith.constant 0 : index
    %c0_98 = arith.constant 0 : index
    %194 = vector.load %arg23[%c0_96, %c0_97, %c0_98] : memref<1x8x256xbf16, #tpu.memory_space<vmem>>, vector<1x8x256xbf16>
    %195 = vector.shape_cast %194 : vector<1x8x256xbf16> to vector<8x256xbf16>
    %196 = vector.shape_cast %193 : vector<8x256xbf16> to vector<1x8x256xbf16>
    tpu.vector_store %arg23[%c0_96, %c0_97, %c0_98], %196 {strides = array<i32>} : memref<1x8x256xbf16, #tpu.memory_space<vmem>>, vector<1x8x256xbf16>,
    %197 = arith.truncf %51 : vector<8x256xf32> to vector<8x256xbf16>
    %c0_99 = arith.constant 0 : index
    %c0_100 = arith.constant 0 : index
    %c0_101 = arith.constant 0 : index
    %198 = vector.load %arg24[%c0_99, %c0_100, %c0_101] : memref<1x8x256xbf16, #tpu.memory_space<vmem>>, vector<1x8x256xbf16>
    %199 = vector.shape_cast %198 : vector<1x8x256xbf16> to vector<8x256xbf16>
    %200 = vector.shape_cast %197 : vector<8x256xbf16> to vector<1x8x256xbf16>
    tpu.vector_store %arg24[%c0_99, %c0_100, %c0_101], %200 {strides = array<i32>} : memref<1x8x256xbf16, #tpu.memory_space<vmem>>, vector<1x8x256xbf16>,
    %201 = arith.truncf %39 : vector<8x256xf32> to vector<8x256xbf16>
    %c0_102 = arith.constant 0 : index
    %c0_103 = arith.constant 0 : index
    %c0_104 = arith.constant 0 : index
    %202 = vector.load %arg25[%c0_102, %c0_103, %c0_104] : memref<1x8x256xbf16, #tpu.memory_space<vmem>>, vector<1x8x256xbf16>
    %203 = vector.shape_cast %202 : vector<1x8x256xbf16> to vector<8x256xbf16>
    %204 = vector.shape_cast %201 : vector<8x256xbf16> to vector<1x8x256xbf16>
    tpu.vector_store %arg25[%c0_102, %c0_103, %c0_104], %204 {strides = array<i32>} : memref<1x8x256xbf16, #tpu.memory_space<vmem>>, vector<1x8x256xbf16>,
    return
  }
  func.func @transform_0(%arg0: i32) -> (i32, i32, i32) {
    %c0_i32 = arith.constant 0 : i32
    %c0_i32_0 = arith.constant 0 : i32
    %c0_i32_1 = arith.constant 0 : i32
    return %arg0, %c0_i32, %c0_i32_0 : i32, i32, i32
  }
  func.func @transform_1(%arg0: i32) -> (i32, i32, i32) {
    %c0_i32 = arith.constant 0 : i32
    %c0_i32_0 = arith.constant 0 : i32
    %c0_i32_1 = arith.constant 0 : i32
    return %arg0, %c0_i32, %c0_i32_0 : i32, i32, i32
  }
  func.func @transform_2(%arg0: i32) -> (i32, i32, i32) {
    %c0_i32 = arith.constant 0 : i32
    %c0_i32_0 = arith.constant 0 : i32
    %c0_i32_1 = arith.constant 0 : i32
    return %arg0, %c0_i32, %c0_i32_0 : i32, i32, i32
  }
  func.func @transform_3(%arg0: i32) -> (i32, i32, i32) {
    %c0_i32 = arith.constant 0 : i32
    %c0_i32_0 = arith.constant 0 : i32
    %c0_i32_1 = arith.constant 0 : i32
    return %arg0, %c0_i32, %c0_i32_0 : i32, i32, i32
  }
  func.func @transform_4(%arg0: i32) -> (i32, i32) {
    %c0_i32 = arith.constant 0 : i32
    %c0_i32_0 = arith.constant 0 : i32
    %c0_i32_1 = arith.constant 0 : i32
    return %c0_i32, %c0_i32_0 : i32, i32
  }
  func.func @transform_5(%arg0: i32) -> (i32, i32) {
    %c0_i32 = arith.constant 0 : i32
    %c0_i32_0 = arith.constant 0 : i32
    %c0_i32_1 = arith.constant 0 : i32
    return %c0_i32, %c0_i32_0 : i32, i32
  }
  func.func @transform_6(%arg0: i32) -> (i32, i32) {
    %c0_i32 = arith.constant 0 : i32
    %c0_i32_0 = arith.constant 0 : i32
    %c0_i32_1 = arith.constant 0 : i32
    return %c0_i32, %c0_i32_0 : i32, i32
  }
  func.func @transform_7(%arg0: i32) -> (i32, i32) {
    %c0_i32 = arith.constant 0 : i32
    %c0_i32_0 = arith.constant 0 : i32
    %c0_i32_1 = arith.constant 0 : i32
    return %c0_i32, %c0_i32_0 : i32, i32
  }
  func.func @transform_8(%arg0: i32) -> (i32, i32) {
    %c0_i32 = arith.constant 0 : i32
    %c0_i32_0 = arith.constant 0 : i32
    %c0_i32_1 = arith.constant 0 : i32
    return %c0_i32, %c0_i32_0 : i32, i32
  }
  func.func @transform_9(%arg0: i32) -> (i32, i32) {
    %c0_i32 = arith.constant 0 : i32
    %c0_i32_0 = arith.constant 0 : i32
    %c0_i32_1 = arith.constant 0 : i32
    return %c0_i32, %c0_i32_0 : i32, i32
  }
  func.func @transform_10(%arg0: i32) -> (i32, i32) {
    %c0_i32 = arith.constant 0 : i32
    %c0_i32_0 = arith.constant 0 : i32
    %c0_i32_1 = arith.constant 0 : i32
    return %c0_i32, %c0_i32_0 : i32, i32
  }
  func.func @transform_11(%arg0: i32) -> (i32, i32, i32) {
    %c0_i32 = arith.constant 0 : i32
    %c0_i32_0 = arith.constant 0 : i32
    %c0_i32_1 = arith.constant 0 : i32
    return %arg0, %c0_i32, %c0_i32_0 : i32, i32, i32
  }
  func.func @transform_12(%arg0: i32) -> (i32, i32, i32) {
    %c0_i32 = arith.constant 0 : i32
    %c0_i32_0 = arith.constant 0 : i32
    %c0_i32_1 = arith.constant 0 : i32
    return %arg0, %c0_i32, %c0_i32_0 : i32, i32, i32
  }
  func.func @transform_13(%arg0: i32) -> (i32, i32, i32) {
    %c0_i32 = arith.constant 0 : i32
    %c0_i32_0 = arith.constant 0 : i32
    %c0_i32_1 = arith.constant 0 : i32
    return %arg0, %c0_i32, %c0_i32_0 : i32, i32, i32
  }
  func.func @transform_14(%arg0: i32) -> (i32, i32, i32) {
    %c0_i32 = arith.constant 0 : i32
    %c0_i32_0 = arith.constant 0 : i32
    %c0_i32_1 = arith.constant 0 : i32
    return %arg0, %c0_i32, %c0_i32_0 : i32, i32, i32
  }
  func.func @transform_15(%arg0: i32) -> (i32, i32, i32) {
    %c0_i32 = arith.constant 0 : i32
    %c0_i32_0 = arith.constant 0 : i32
    %c0_i32_1 = arith.constant 0 : i32
    return %arg0, %c0_i32, %c0_i32_0 : i32, i32, i32
  }
  func.func @transform_16(%arg0: i32) -> (i32, i32, i32) {
    %c0_i32 = arith.constant 0 : i32
    %c0_i32_0 = arith.constant 0 : i32
    %c0_i32_1 = arith.constant 0 : i32
    return %arg0, %c0_i32, %c0_i32_0 : i32, i32, i32
  }
  func.func @transform_17(%arg0: i32) -> (i32, i32, i32) {
    %c0_i32 = arith.constant 0 : i32
    %c0_i32_0 = arith.constant 0 : i32
    %c0_i32_1 = arith.constant 0 : i32
    return %arg0, %c0_i32, %c0_i32_0 : i32, i32, i32
  }
  func.func @transform_18(%arg0: i32) -> (i32, i32, i32) {
    %c0_i32 = arith.constant 0 : i32
    %c0_i32_0 = arith.constant 0 : i32
    %c0_i32_1 = arith.constant 0 : i32
    return %arg0, %c0_i32, %c0_i32_0 : i32, i32, i32
  }
  func.func @transform_19(%arg0: i32) -> (i32, i32, i32) {
    %c0_i32 = arith.constant 0 : i32
    %c0_i32_0 = arith.constant 0 : i32
    %c0_i32_1 = arith.constant 0 : i32
    return %arg0, %c0_i32, %c0_i32_0 : i32, i32, i32
  }
  func.func @transform_20(%arg0: i32) -> (i32, i32, i32) {
    %c0_i32 = arith.constant 0 : i32
    %c0_i32_0 = arith.constant 0 : i32
    %c0_i32_1 = arith.constant 0 : i32
    return %arg0, %c0_i32, %c0_i32_0 : i32, i32, i32
  }
  func.func @transform_21(%arg0: i32) -> (i32, i32, i32) {
    %c0_i32 = arith.constant 0 : i32
    %c0_i32_0 = arith.constant 0 : i32
    %c0_i32_1 = arith.constant 0 : i32
    return %arg0, %c0_i32, %c0_i32_0 : i32, i32, i32
  }
  func.func @transform_22(%arg0: i32) -> (i32, i32, i32) {
    %c0_i32 = arith.constant 0 : i32
    %c0_i32_0 = arith.constant 0 : i32
    %c0_i32_1 = arith.constant 0 : i32
    return %arg0, %c0_i32, %c0_i32_0 : i32, i32, i32
  }
  func.func @transform_23(%arg0: i32) -> (i32, i32, i32) {
    %c0_i32 = arith.constant 0 : i32
    %c0_i32_0 = arith.constant 0 : i32
    %c0_i32_1 = arith.constant 0 : i32
    return %arg0, %c0_i32, %c0_i32_0 : i32, i32, i32
  }
  func.func @transform_24(%arg0: i32) -> (i32, i32, i32) {
    %c0_i32 = arith.constant 0 : i32
    %c0_i32_0 = arith.constant 0 : i32
    %c0_i32_1 = arith.constant 0 : i32
    return %arg0, %c0_i32, %c0_i32_0 : i32, i32, i32
  }
}

</mosaic_0001>

<llo_original>
// kernel: tpu_custom_call.1
$region0: #{tpu_custom_call.1}
  #allocation0 [shape = 'u32[]', space=smem, size = 0x4, offset = 0x4, fixed_abs, tag = 'smem constant byte address 0x4 - core index']
  #allocation1 [shape = 'u32[144,128]{1,0:T(1,128)}', space=vmem, size = 0x12000, scoped, tag = 'internal scratch']
  %s0 = inlined_call_operand.vmem [shape: f32[1,8,256], index: 0, kind: input, shape index: {}]
  %s1 = inlined_call_operand.vmem [shape: f32[1,8,256], index: 1, kind: input, shape index: {}]
  %s2 = inlined_call_operand.vmem [shape: f32[1,8,256], index: 2, kind: input, shape index: {}]
  %s3 = inlined_call_operand.vmem [shape: f32[1,8,256], index: 3, kind: input, shape index: {}]
  %s4 = inlined_call_operand.vmem [shape: f32[2,256], index: 4, kind: input, shape index: {}]
  %s5 = inlined_call_operand.vmem [shape: f32[128,8], index: 5, kind: input, shape index: {}]
  %s6 = inlined_call_operand.vmem [shape: f32[128,1], index: 6, kind: input, shape index: {}]
  %s7 = inlined_call_operand.vmem [shape: f32[32,128], index: 7, kind: input, shape index: {}]
  %s8 = inlined_call_operand.vmem [shape: f32[32,1], index: 8, kind: input, shape index: {}]
  %s9 = inlined_call_operand.vmem [shape: f32[8,1], index: 9, kind: input, shape index: {}]
  %s10 = inlined_call_operand.vmem [shape: f32[8,1], index: 10, kind: input, shape index: {}]
  %s11 = inlined_call_operand.hbm [shape: f32[1,8,256], index: 11, kind: output, shape index: {0}]
  %s12 = inlined_call_operand.hbm [shape: f32[1,8,256], index: 12, kind: output, shape index: {1}]
  %s13 = inlined_call_operand.hbm [shape: f32[1,2,256], index: 13, kind: output, shape index: {2}]
  %s14 = inlined_call_operand.hbm [shape: f32[1,2,256], index: 14, kind: output, shape index: {3}]
  %s15 = inlined_call_operand.hbm [shape: f32[1,8,256], index: 15, kind: output, shape index: {4}]
  %s16 = inlined_call_operand.hbm [shape: f32[1,8,256], index: 16, kind: output, shape index: {5}]
  %s17 = inlined_call_operand.hbm [shape: f32[1,8,256], index: 17, kind: output, shape index: {6}]
  %s18 = inlined_call_operand.hbm [shape: f32[1,2,256], index: 18, kind: output, shape index: {7}]
  %s19 = inlined_call_operand.hbm [shape: f32[1,1,128], index: 19, kind: output, shape index: {8}]
  %s20 = inlined_call_operand.hbm [shape: bf16[1,8,256], index: 20, kind: output, shape index: {9}]
  %s21 = inlined_call_operand.hbm [shape: bf16[1,8,256], index: 21, kind: output, shape index: {10}]
  %s22 = inlined_call_operand.hbm [shape: bf16[1,8,256], index: 22, kind: output, shape index: {11}]
  %s23 = inlined_call_operand.hbm [shape: bf16[1,8,256], index: 23, kind: output, shape index: {12}]
  %s24 = inlined_call_operand.hbm [shape: bf16[1,8,256], index: 24, kind: output, shape index: {13}]
  %25 = xla_tuple %s11, %s12, %s13, %s14, %s15, %s16, %s17, %s18, %s19, %s20, %s21, %s22, %s23, %s24
  %s26 = sld [smem:[#allocation0]]
  $region158: #{tpu_custom_call.1} parent=0
    _
  %s28 = ssub.s32 1, %s26
  %s29 = scalar_select 0, %s28, %s26
  $region1: #{tpu_custom_call.1} parent=0
    #allocation2 [shape = 'u8[8192]{0}', space=vmem, size = 0x2000, scoped, tag = 'output window, operand 0, single buffered']
    #allocation3 [shape = 's32[1]{0}', space=sflag, size = 0x4, scoped, tag = 'scoped memory for tpu_custom_call.1']
    #allocation4 [shape = 'u8[8192]{0}', space=vmem, size = 0x2000, scoped, tag = 'output window, operand 1, single buffered']
    #allocation5 [shape = 's32[1]{0}', space=sflag, size = 0x4, scoped, tag = 'scoped memory for tpu_custom_call.1']
    #allocation6 [shape = 'u8[2048]{0}', space=vmem, size = 0x800, scoped, tag = 'output window, operand 2, single buffered']
    #allocation7 [shape = 'u8[2048]{0}', space=vmem, size = 0x800, scoped, tag = 'output window, operand 3, single buffered']
    #allocation8 [shape = 's32[1]{0}', space=sflag, size = 0x4, scoped, tag = 'scoped memory for tpu_custom_call.1']
    #allocation9 [shape = 'u8[8192]{0}', space=vmem, size = 0x2000, scoped, tag = 'output window, operand 4, single buffered']
    #allocation10 [shape = 'u8[8192]{0}', space=vmem, size = 0x2000, scoped, tag = 'output window, operand 5, single buffered']
    #allocation11 [shape = 's32[1]{0}', space=sflag, size = 0x4, scoped, tag = 'scoped memory for tpu_custom_call.1']
    #allocation12 [shape = 'u8[8192]{0}', space=vmem, size = 0x2000, scoped, tag = 'output window, operand 6, single buffered']
    #allocation13 [shape = 'u8[2048]{0}', space=vmem, size = 0x800, scoped, tag = 'output window, operand 7, single buffered']
    #allocation14 [shape = 's32[1]{0}', space=sflag, size = 0x4, scoped, tag = 'scoped memory for tpu_custom_call.1']
    #allocation15 [shape = 'u8[512]{0}', space=vmem, size = 0x400, scoped, tag = 'output window, operand 8, single buffered']
    #allocation16 [shape = 'u8[4096]{0}', space=vmem, size = 0x1000, scoped, tag = 'output window, operand 9, single buffered']
    #allocation17 [shape = 's32[1]{0}', space=sflag, size = 0x4, scoped, tag = 'scoped memory for tpu_custom_call.1']
    #allocation18 [shape = 'u8[4096]{0}', space=vmem, size = 0x1000, scoped, tag = 'output window, operand 10, single buffered']
    #allocation19 [shape = 'u8[4096]{0}', space=vmem, size = 0x1000, scoped, tag = 'output window, operand 11, single buffered']
    #allocation20 [shape = 's32[1]{0}', space=sflag, size = 0x4, scoped, tag = 'scoped memory for tpu_custom_call.1']
    #allocation21 [shape = 'u8[4096]{0}', space=vmem, size = 0x1000, scoped, tag = 'output window, operand 12, single buffered']
    #allocation22 [shape = 'u8[4096]{0}', space=vmem, size = 0x1000, scoped, tag = 'output window, operand 13, single buffered']
    #allocation23 [shape = 's32[1]{0}', space=sflag, size = 0x4, scoped, tag = 'scoped memory for tpu_custom_call.1']
    %30 = vsyncpa [#allocation3], 0
    %31 = vsyncpa [#allocation5], 0
    %32 = vsyncpa [#allocation8], 0
    %33 = vsyncpa [#allocation11], 0
    %34 = vsyncpa [#allocation14], 0
    %35 = vsyncpa [#allocation17], 0
    %36 = vsyncpa [#allocation20], 0
    %37 = vsyncpa [#allocation23], 0
    // Predicated region
    $region2: #{tpu_custom_call.1} parent=1 // pred_check
      _
    $region3: #{tpu_custom_call.1} parent=1 // pred_check_branch
      %39 = sbr.rel (0) target = $region5
    $region4: #{tpu_custom_call.1} parent=1 // pred_region
      _
    $region5: #{tpu_custom_call.1} parent=1 // pred_fallthru
      _
    // Predicated region
    $region6: #{tpu_custom_call.1} parent=1 // pred_check
      _
    $region7: #{tpu_custom_call.1} parent=1 // pred_check_branch
      %41 = sbr.rel (0) target = $region9
    $region8: #{tpu_custom_call.1} parent=1 // pred_region
      _
    $region9: #{tpu_custom_call.1} parent=1 // pred_fallthru
      _
    // Predicated region
    $region10: #{tpu_custom_call.1} parent=1 // pred_check
      _
    $region11: #{tpu_custom_call.1} parent=1 // pred_check_branch
      %43 = sbr.rel (0) target = $region13
    $region12: #{tpu_custom_call.1} parent=1 // pred_region
      _
    $region13: #{tpu_custom_call.1} parent=1 // pred_fallthru
      _
    // Predicated region
    $region14: #{tpu_custom_call.1} parent=1 // pred_check
      _
    $region15: #{tpu_custom_call.1} parent=1 // pred_check_branch
      %45 = sbr.rel (0) target = $region17
    $region16: #{tpu_custom_call.1} parent=1 // pred_region
      _
    $region17: #{tpu_custom_call.1} parent=1 // pred_fallthru
      _
    // Predicated region
    $region18: #{tpu_custom_call.1} parent=1 // pred_check
      _
    $region19: #{tpu_custom_call.1} parent=1 // pred_check_branch
      %47 = sbr.rel (0) target = $region21
    $region20: #{tpu_custom_call.1} parent=1 // pred_region
      _
    $region21: #{tpu_custom_call.1} parent=1 // pred_fallthru
      _
    // Predicated region
    $region22: #{tpu_custom_call.1} parent=1 // pred_check
      _
    $region23: #{tpu_custom_call.1} parent=1 // pred_check_branch
      %49 = sbr.rel (0) target = $region25
    $region24: #{tpu_custom_call.1} parent=1 // pred_region
      _
    $region25: #{tpu_custom_call.1} parent=1 // pred_fallthru
      _
    // Predicated region
    $region26: #{tpu_custom_call.1} parent=1 // pred_check
      _
    $region27: #{tpu_custom_call.1} parent=1 // pred_check_branch
      %51 = sbr.rel (0) target = $region29
    $region28: #{tpu_custom_call.1} parent=1 // pred_region
      _
    $region29: #{tpu_custom_call.1} parent=1 // pred_fallthru
      _
    // Predicated region
    $region30: #{tpu_custom_call.1} parent=1 // pred_check
      _
    $region31: #{tpu_custom_call.1} parent=1 // pred_check_branch
      %53 = sbr.rel (0) target = $region33
    $region32: #{tpu_custom_call.1} parent=1 // pred_region
      _
    $region33: #{tpu_custom_call.1} parent=1 // pred_fallthru
      _
    // Predicated region
    $region34: #{tpu_custom_call.1} parent=1 // pred_check
      _
    $region35: #{tpu_custom_call.1} parent=1 // pred_check_branch
      %55 = sbr.rel (0) target = $region37
    $region36: #{tpu_custom_call.1} parent=1 // pred_region
      _
    $region37: #{tpu_custom_call.1} parent=1 // pred_fallthru
      _
    // Predicated region
    $region38: #{tpu_custom_call.1} parent=1 // pred_check
      _
    $region39: #{tpu_custom_call.1} parent=1 // pred_check_branch
      %57 = sbr.rel (0) target = $region41
    $region40: #{tpu_custom_call.1} parent=1 // pred_region
      _
    $region41: #{tpu_custom_call.1} parent=1 // pred_fallthru
      _
    // Predicated region
    $region42: #{tpu_custom_call.1} parent=1 // pred_check
      _
    $region43: #{tpu_custom_call.1} parent=1 // pred_check_branch
      %59 = sbr.rel (0) target = $region45
    $region44: #{tpu_custom_call.1} parent=1 // pred_region
      _
    $region45: #{tpu_custom_call.1} parent=1 // pred_fallthru
      _
    %v60 = vld [vmem:[%s0] sm:$0xff]
    %v61 = vld [vmem:[%s0 + $0x8] sm:$0xff]
    %v62 = vld [vmem:[%s5] sm:$0xff]
    %v63 = vld [vmem:[%s5 + $0x8] sm:$0xff]
    %v64 = vld [vmem:[%s5 + $0x10] sm:$0xff]
    %v65 = vld [vmem:[%s5 + $0x18] sm:$0xff]
    %v66 = vld [vmem:[%s5 + $0x20] sm:$0xff]
    %v67 = vld [vmem:[%s5 + $0x28] sm:$0xff]
    %v68 = vld [vmem:[%s5 + $0x30] sm:$0xff]
    %v69 = vld [vmem:[%s5 + $0x38] sm:$0xff]
    %v70 = vld [vmem:[%s5 + $0x40] sm:$0xff]
    %v71 = vld [vmem:[%s5 + $0x48] sm:$0xff]
    %v72 = vld [vmem:[%s5 + $0x50] sm:$0xff]
    %v73 = vld [vmem:[%s5 + $0x58] sm:$0xff]
    %v74 = vld [vmem:[%s5 + $0x60] sm:$0xff]
    %v75 = vld [vmem:[%s5 + $0x68] sm:$0xff]
    %v76 = vld [vmem:[%s5 + $0x70] sm:$0xff]
    %v77 = vld [vmem:[%s5 + $0x78] sm:$0xff]
    %v78 = vld [vmem:[%s6] sm:$0xff]
    %v79 = vld [vmem:[%s6 + $0x8] sm:$0xff]
    %v80 = vld [vmem:[%s6 + $0x10] sm:$0xff]
    %v81 = vld [vmem:[%s6 + $0x18] sm:$0xff]
    %v82 = vld [vmem:[%s6 + $0x20] sm:$0xff]
    %v83 = vld [vmem:[%s6 + $0x28] sm:$0xff]
    %v84 = vld [vmem:[%s6 + $0x30] sm:$0xff]
    %v85 = vld [vmem:[%s6 + $0x38] sm:$0xff]
    %v86 = vld [vmem:[%s6 + $0x40] sm:$0xff]
    %v87 = vld [vmem:[%s6 + $0x48] sm:$0xff]
    %v88 = vld [vmem:[%s6 + $0x50] sm:$0xff]
    %v89 = vld [vmem:[%s6 + $0x58] sm:$0xff]
    %v90 = vld [vmem:[%s6 + $0x60] sm:$0xff]
    %v91 = vld [vmem:[%s6 + $0x68] sm:$0xff]
    %v92 = vld [vmem:[%s6 + $0x70] sm:$0xff]
    %v93 = vld [vmem:[%s6 + $0x78] sm:$0xff]
    %95 = vset.pattern.permute.xlu0 0
    %96 = vperm.xlu0 %95, %v78
    %v97 = vpop.permute.xlu0 %96
    %100 = vset.pattern.permute.xlu0 0
    %101 = vperm.xlu0 %100, %v79
    %v102 = vpop.permute.xlu0 %101
    %105 = vset.pattern.permute.xlu0 0
    %106 = vperm.xlu0 %105, %v80
    %v107 = vpop.permute.xlu0 %106
    %110 = vset.pattern.permute.xlu0 0
    %111 = vperm.xlu0 %110, %v81
    %v112 = vpop.permute.xlu0 %111
    %115 = vset.pattern.permute.xlu0 0
    %116 = vperm.xlu0 %115, %v82
    %v117 = vpop.permute.xlu0 %116
    %120 = vset.pattern.permute.xlu0 0
    %121 = vperm.xlu0 %120, %v83
    %v122 = vpop.permute.xlu0 %121
    %125 = vset.pattern.permute.xlu0 0
    %126 = vperm.xlu0 %125, %v84
    %v127 = vpop.permute.xlu0 %126
    %130 = vset.pattern.permute.xlu0 0
    %131 = vperm.xlu0 %130, %v85
    %v132 = vpop.permute.xlu0 %131
    %135 = vset.pattern.permute.xlu0 0
    %136 = vperm.xlu0 %135, %v86
    %v137 = vpop.permute.xlu0 %136
    %140 = vset.pattern.permute.xlu0 0
    %141 = vperm.xlu0 %140, %v87
    %v142 = vpop.permute.xlu0 %141
    %145 = vset.pattern.permute.xlu0 0
    %146 = vperm.xlu0 %145, %v88
    %v147 = vpop.permute.xlu0 %146
    %150 = vset.pattern.permute.xlu0 0
    %151 = vperm.xlu0 %150, %v89
    %v152 = vpop.permute.xlu0 %151
    %155 = vset.pattern.permute.xlu0 0
    %156 = vperm.xlu0 %155, %v90
    %v157 = vpop.permute.xlu0 %156
    %160 = vset.pattern.permute.xlu0 0
    %161 = vperm.xlu0 %160, %v91
    %v162 = vpop.permute.xlu0 %161
    %165 = vset.pattern.permute.xlu0 0
    %166 = vperm.xlu0 %165, %v92
    %v167 = vpop.permute.xlu0 %166
    %170 = vset.pattern.permute.xlu0 0
    %171 = vperm.xlu0 %170, %v93
    %v172 = vpop.permute.xlu0 %171
    %vm174 = vcmask 64512
    %v176 = vsel %vm174, %v62, 0
    %v179 = vsel %vm174, %v63, 0
    %v182 = vsel %vm174, %v64, 0
    %v185 = vsel %vm174, %v65, 0
    %v188 = vsel %vm174, %v66, 0
    %v191 = vsel %vm174, %v67, 0
    %v194 = vsel %vm174, %v68, 0
    %v197 = vsel %vm174, %v69, 0
    %v200 = vsel %vm174, %v70, 0
    %v203 = vsel %vm174, %v71, 0
    %v206 = vsel %vm174, %v72, 0
    %v209 = vsel %vm174, %v73, 0
    %v212 = vsel %vm174, %v74, 0
    %v215 = vsel %vm174, %v75, 0
    %v218 = vsel %vm174, %v76, 0
    %v221 = vsel %vm174, %v77, 0
    %223 = vmatprep.subr.mxu0 0.0
    %224 = vmatpush1.msra.mxu0 0.0
    %225 = vmatprep.subr.mxu0 0.0
    %226 = vmatpush1.msra.mxu0 0.0
    %227 = vmatprep.subr.mxu0 0.0
    %228 = vmatpush1.msra.mxu0 0.0
    %229 = vmatprep.subr.mxu0 0.0
    %230 = vmatpush1.msra.mxu0 0.0
    %231 = vmatprep.subr.mxu0 0.0
    %232 = vmatpush1.msra.mxu0 0.0
    %233 = vmatprep.subr.mxu0 0.0
    %234 = vmatpush1.msra.mxu0 0.0
    %235 = vmatprep.subr.mxu0 0.0
    %236 = vmatpush1.msra.mxu0 0.0
    %237 = vmatprep.subr.mxu0 0.0
    %238 = vmatpush1.msra.mxu0 0.0
    %239 = vmatprep.subr.mxu0 0.0
    %240 = vmatpush1.msra.mxu0 0.0
    %241 = vmatprep.subr.mxu0 0.0
    %242 = vmatpush1.msra.mxu0 0.0
    %243 = vmatprep.subr.mxu0 0.0
    %244 = vmatpush1.msra.mxu0 0.0
    %245 = vmatprep.subr.mxu0 0.0
    %246 = vmatpush1.msra.mxu0 0.0
    %247 = vmatprep.subr.mxu0 0.0
    %248 = vmatpush1.msra.mxu0 0.0
    %249 = vmatprep.subr.mxu0 0.0
    %250 = vmatpush1.msra.mxu0 0.0
    %251 = vmatprep.subr.mxu0 0.0
    %252 = vmatpush1.msra.mxu0 0.0
    %253 = vmatprep.subr.mxu0 %v61
    %254 = vmatpush1.msra.mxu0 %v60
    %255 = vmatprep.subr.mxu0 0.0
    %256 = vmatpush2.msra.mxu0 0.0
    %257 = vmatprep.subr.mxu0 0.0
    %258 = vmatpush2.msra.mxu0 0.0
    %259 = vmatprep.subr.mxu0 0.0
    %260 = vmatpush2.msra.mxu0 0.0
    %261 = vmatprep.subr.mxu0 0.0
    %262 = vmatpush2.msra.mxu0 0.0
    %263 = vmatprep.subr.mxu0 0.0
    %264 = vmatpush2.msra.mxu0 0.0
    %265 = vmatprep.subr.mxu0 0.0
    %266 = vmatpush2.msra.mxu0 0.0
    %267 = vmatprep.subr.mxu0 0.0
    %268 = vmatpush2.msra.mxu0 0.0
    %269 = vmatprep.subr.mxu0 0.0
    %270 = vmatpush2.msra.mxu0 0.0
    %271 = vmatprep.subr.mxu0 0.0
    %272 = vmatpush2.msra.mxu0 0.0
    %273 = vmatprep.subr.mxu0 0.0
    %274 = vmatpush2.msra.mxu0 0.0
    %275 = vmatprep.subr.mxu0 0.0
    %276 = vmatpush2.msra.mxu0 0.0
    %277 = vmatprep.subr.mxu0 0.0
    %278 = vmatpush2.msra.mxu0 0.0
    %279 = vmatprep.subr.mxu0 0.0
    %280 = vmatpush2.msra.mxu0 0.0
    %281 = vmatprep.subr.mxu0 0.0
    %282 = vmatpush2.msra.mxu0 0.0
    %283 = vmatprep.subr.mxu0 0.0
    %284 = vmatpush2.msra.mxu0 0.0
    %285 = vmatprep.subr.mxu0 0.0
    %286 = vmatpush2.msra.mxu0 0.0
    %287 = vmatprep.mubr.f32.mxu0 0.0
    %288 = vmatmul.mubr.f32.gmra.mxu0 %v176
    %v289 = vpop.f32.mrf.mxu0
    %v290 = vadd.f32 %v97, %v289
    %v291 = vpop.f32.mrf.mxu0
    %v292 = vadd.f32 %v97, %v291
    %293 = vmatprep.mubr.f32.mxu0 0.0
    %294 = vmatmul.mubr.f32.gmra.mxu0 %v179
    %v295 = vpop.f32.mrf.mxu0
    %v296 = vadd.f32 %v102, %v295
    %v297 = vpop.f32.mrf.mxu0
    %v298 = vadd.f32 %v102, %v297
    %299 = vmatprep.mubr.f32.mxu0 0.0
    %300 = vmatmul.mubr.f32.gmra.mxu0 %v182
    %v301 = vpop.f32.mrf.mxu0
    %v302 = vadd.f32 %v107, %v301
    %v303 = vpop.f32.mrf.mxu0
    %v304 = vadd.f32 %v107, %v303
    %305 = vmatprep.mubr.f32.mxu0 0.0
    %306 = vmatmul.mubr.f32.gmra.mxu0 %v185
    %v307 = vpop.f32.mrf.mxu0
    %v308 = vadd.f32 %v112, %v307
    %v309 = vpop.f32.mrf.mxu0
    %v310 = vadd.f32 %v112, %v309
    %311 = vmatprep.mubr.f32.mxu0 0.0
    %312 = vmatmul.mubr.f32.gmra.mxu0 %v188
    %v313 = vpop.f32.mrf.mxu0
    %v314 = vadd.f32 %v117, %v313
    %v315 = vpop.f32.mrf.mxu0
    %v316 = vadd.f32 %v117, %v315
    %317 = vmatprep.mubr.f32.mxu0 0.0
    %318 = vmatmul.mubr.f32.gmra.mxu0 %v191
    %v319 = vpop.f32.mrf.mxu0
    %v320 = vadd.f32 %v122, %v319
    %v321 = vpop.f32.mrf.mxu0
    %v322 = vadd.f32 %v122, %v321
    %323 = vmatprep.mubr.f32.mxu0 0.0
    %324 = vmatmul.mubr.f32.gmra.mxu0 %v194
    %v325 = vpop.f32.mrf.mxu0
    %v326 = vadd.f32 %v127, %v325
    %v327 = vpop.f32.mrf.mxu0
    %v328 = vadd.f32 %v127, %v327
    %329 = vmatprep.mubr.f32.mxu0 0.0
    %330 = vmatmul.mubr.f32.gmra.mxu0 %v197
    %v331 = vpop.f32.mrf.mxu0
    %v332 = vadd.f32 %v132, %v331
    %v333 = vpop.f32.mrf.mxu0
    %v334 = vadd.f32 %v132, %v333
    %335 = vmatprep.mubr.f32.mxu0 0.0
    %336 = vmatmul.mubr.f32.gmra.mxu0 %v200
    %v337 = vpop.f32.mrf.mxu0
    %v338 = vadd.f32 %v137, %v337
    %v339 = vpop.f32.mrf.mxu0
    %v340 = vadd.f32 %v137, %v339
    %341 = vmatprep.mubr.f32.mxu0 0.0
    %342 = vmatmul.mubr.f32.gmra.mxu0 %v203
    %v343 = vpop.f32.mrf.mxu0
    %v344 = vadd.f32 %v142, %v343
    %v345 = vpop.f32.mrf.mxu0
    %v346 = vadd.f32 %v142, %v345
    %347 = vmatprep.mubr.f32.mxu0 0.0
    %348 = vmatmul.mubr.f32.gmra.mxu0 %v206
    %v349 = vpop.f32.mrf.mxu0
    %v350 = vadd.f32 %v147, %v349
    %v351 = vpop.f32.mrf.mxu0
    %v352 = vadd.f32 %v147, %v351
    %353 = vmatprep.mubr.f32.mxu0 0.0
    %354 = vmatmul.mubr.f32.gmra.mxu0 %v209
    %v355 = vpop.f32.mrf.mxu0
    %v356 = vadd.f32 %v152, %v355
    %v357 = vpop.f32.mrf.mxu0
    %v358 = vadd.f32 %v152, %v357
    %359 = vmatprep.mubr.f32.mxu0 0.0
    %360 = vmatmul.mubr.f32.gmra.mxu0 %v212
    %v361 = vpop.f32.mrf.mxu0
    %v362 = vadd.f32 %v157, %v361
    %v363 = vpop.f32.mrf.mxu0
    %v364 = vadd.f32 %v157, %v363
    %365 = vmatprep.mubr.f32.mxu0 0.0
    %366 = vmatmul.mubr.f32.gmra.mxu0 %v215
    %v367 = vpop.f32.mrf.mxu0
    %v368 = vadd.f32 %v162, %v367
    %v369 = vpop.f32.mrf.mxu0
    %v370 = vadd.f32 %v162, %v369
    %371 = vmatprep.mubr.f32.mxu0 0.0
    %372 = vmatmul.mubr.f32.gmra.mxu0 %v218
    %v373 = vpop.f32.mrf.mxu0
    %v374 = vadd.f32 %v167, %v373
    %v375 = vpop.f32.mrf.mxu0
    %v376 = vadd.f32 %v167, %v375
    %377 = vmatprep.mubr.f32.mxu0 0.0
    %378 = vmatmul.mubr.f32.gmra.mxu0 %v221
    %v379 = vpop.f32.mrf.mxu0
    %v380 = vadd.f32 %v172, %v379
    %v381 = vpop.f32.mrf.mxu0
    %v382 = vadd.f32 %v172, %v381
    %383 = vdwg.mxu0
    %v384 = vmax.f32 %v290, 0.0
    %v385 = vmax.f32 %v292, 0.0
    %v386 = vmax.f32 %v296, 0.0
    %v387 = vmax.f32 %v298, 0.0
    %v388 = vmax.f32 %v302, 0.0
    %v389 = vmax.f32 %v304, 0.0
    %v390 = vmax.f32 %v308, 0.0
    %v391 = vmax.f32 %v310, 0.0
    %v392 = vmax.f32 %v314, 0.0
    %v393 = vmax.f32 %v316, 0.0
    %v394 = vmax.f32 %v320, 0.0
    %v395 = vmax.f32 %v322, 0.0
    %v396 = vmax.f32 %v326, 0.0
    %v397 = vmax.f32 %v328, 0.0
    %v398 = vmax.f32 %v332, 0.0
    %v399 = vmax.f32 %v334, 0.0
    %v400 = vmax.f32 %v338, 0.0
    %v401 = vmax.f32 %v340, 0.0
    %v402 = vmax.f32 %v344, 0.0
    %v403 = vmax.f32 %v346, 0.0
    %v404 = vmax.f32 %v350, 0.0
    %v405 = vmax.f32 %v352, 0.0
    %v406 = vmax.f32 %v356, 0.0
    %v407 = vmax.f32 %v358, 0.0
    %v408 = vmax.f32 %v362, 0.0
    %v409 = vmax.f32 %v364, 0.0
    %v410 = vmax.f32 %v368, 0.0
    %v411 = vmax.f32 %v370, 0.0
    %v412 = vmax.f32 %v374, 0.0
    %v413 = vmax.f32 %v376, 0.0
    %v414 = vmax.f32 %v380, 0.0
    %v415 = vmax.f32 %v382, 0.0
    %v416 = vld [vmem:[%s7] sm:$0xff]
    %v417 = vld [vmem:[%s7 + $0x8] sm:$0xff]
    %v418 = vld [vmem:[%s7 + $0x10] sm:$0xff]
    %v419 = vld [vmem:[%s7 + $0x18] sm:$0xff]
    %v420 = vld [vmem:[%s8] sm:$0xff]
    %v421 = vld [vmem:[%s8 + $0x8] sm:$0xff]
    %v422 = vld [vmem:[%s8 + $0x10] sm:$0xff]
    %v423 = vld [vmem:[%s8 + $0x18] sm:$0xff]
    %425 = vset.pattern.permute.xlu0 0
    %426 = vperm.xlu0 %425, %v420
    %v427 = vpop.permute.xlu0 %426
    %430 = vset.pattern.permute.xlu0 0
    %431 = vperm.xlu0 %430, %v421
    %v432 = vpop.permute.xlu0 %431
    %435 = vset.pattern.permute.xlu0 0
    %436 = vperm.xlu0 %435, %v422
    %v437 = vpop.permute.xlu0 %436
    %440 = vset.pattern.permute.xlu0 0
    %441 = vperm.xlu0 %440, %v423
    %v442 = vpop.permute.xlu0 %441
    %444 = vmatprep.subr.mxu0 %v415
    %445 = vmatpush1.msra.mxu0 %v414
    %446 = vmatprep.subr.mxu0 %v413
    %447 = vmatpush1.msra.mxu0 %v412
    %448 = vmatprep.subr.mxu0 %v411
    %449 = vmatpush1.msra.mxu0 %v410
    %450 = vmatprep.subr.mxu0 %v409
    %451 = vmatpush1.msra.mxu0 %v408
    %452 = vmatprep.subr.mxu0 %v407
    %453 = vmatpush1.msra.mxu0 %v406
    %454 = vmatprep.subr.mxu0 %v405
    %455 = vmatpush1.msra.mxu0 %v404
    %456 = vmatprep.subr.mxu0 %v403
    %457 = vmatpush1.msra.mxu0 %v402
    %458 = vmatprep.subr.mxu0 %v401
    %459 = vmatpush1.msra.mxu0 %v400
    %460 = vmatprep.subr.mxu0 %v399
    %461 = vmatpush1.msra.mxu0 %v398
    %462 = vmatprep.subr.mxu0 %v397
    %463 = vmatpush1.msra.mxu0 %v396
    %464 = vmatprep.subr.mxu0 %v395
    %465 = vmatpush1.msra.mxu0 %v394
    %466 = vmatprep.subr.mxu0 %v393
    %467 = vmatpush1.msra.mxu0 %v392
    %468 = vmatprep.subr.mxu0 %v391
    %469 = vmatpush1.msra.mxu0 %v390
    %470 = vmatprep.subr.mxu0 %v389
    %471 = vmatpush1.msra.mxu0 %v388
    %472 = vmatprep.subr.mxu0 %v387
    %473 = vmatpush1.msra.mxu0 %v386
    %474 = vmatprep.subr.mxu0 %v385
    %475 = vmatpush1.msra.mxu0 %v384
    %476 = vmatprep.subr.mxu0 0.0
    %477 = vmatpush2.msra.mxu0 0.0
    %478 = vmatprep.subr.mxu0 0.0
    %479 = vmatpush2.msra.mxu0 0.0
    %480 = vmatprep.subr.mxu0 0.0
    %481 = vmatpush2.msra.mxu0 0.0
    %482 = vmatprep.subr.mxu0 0.0
    %483 = vmatpush2.msra.mxu0 0.0
    %484 = vmatprep.subr.mxu0 0.0
    %485 = vmatpush2.msra.mxu0 0.0
    %486 = vmatprep.subr.mxu0 0.0
    %487 = vmatpush2.msra.mxu0 0.0
    %488 = vmatprep.subr.mxu0 0.0
    %489 = vmatpush2.msra.mxu0 0.0
    %490 = vmatprep.subr.mxu0 0.0
    %491 = vmatpush2.msra.mxu0 0.0
    %492 = vmatprep.subr.mxu0 0.0
    %493 = vmatpush2.msra.mxu0 0.0
    %494 = vmatprep.subr.mxu0 0.0
    %495 = vmatpush2.msra.mxu0 0.0
    %496 = vmatprep.subr.mxu0 0.0
    %497 = vmatpush2.msra.mxu0 0.0
    %498 = vmatprep.subr.mxu0 0.0
    %499 = vmatpush2.msra.mxu0 0.0
    %500 = vmatprep.subr.mxu0 0.0
    %501 = vmatpush2.msra.mxu0 0.0
    %502 = vmatprep.subr.mxu0 0.0
    %503 = vmatpush2.msra.mxu0 0.0
    %504 = vmatprep.subr.mxu0 0.0
    %505 = vmatpush2.msra.mxu0 0.0
    %506 = vmatprep.subr.mxu0 0.0
    %507 = vmatpush2.msra.mxu0 0.0
    %508 = vmatprep.mubr.f32.mxu0 0.0
    %509 = vmatmul.mubr.f32.gmra.mxu0 %v416
    %v510 = vpop.f32.mrf.mxu0
    %v511 = vadd.f32 %v427, %v510
    %v512 = vpop.f32.mrf.mxu0
    %v513 = vadd.f32 %v427, %v512
    %514 = vmatprep.mubr.f32.mxu0 0.0
    %515 = vmatmul.mubr.f32.gmra.mxu0 %v417
    %v516 = vpop.f32.mrf.mxu0
    %v517 = vadd.f32 %v432, %v516
    %v518 = vpop.f32.mrf.mxu0
    %v519 = vadd.f32 %v432, %v518
    %520 = vmatprep.mubr.f32.mxu0 0.0
    %521 = vmatmul.mubr.f32.gmra.mxu0 %v418
    %v522 = vpop.f32.mrf.mxu0
    %v523 = vadd.f32 %v437, %v522
    %v524 = vpop.f32.mrf.mxu0
    %v525 = vadd.f32 %v437, %v524
    %526 = vmatprep.mubr.f32.mxu0 0.0
    %527 = vmatmul.mubr.f32.gmra.mxu0 %v419
    %v528 = vpop.f32.mrf.mxu0
    %v529 = vadd.f32 %v442, %v528
    %v530 = vpop.f32.mrf.mxu0
    %v531 = vadd.f32 %v442, %v530
    %532 = vdwg.mxu0
    %v533 = vmax.f32 %v517, -20.0
    %v534 = vmax.f32 %v519, -20.0
    %v535 = vmin.f32 %v533, 0.0
    %v536 = vmin.f32 %v534, 0.0
    %v537 = vmax.f32 %v529, -20.0
    %v538 = vmax.f32 %v531, -20.0
    %v539 = vmin.f32 %v537, 0.0
    %v540 = vmin.f32 %v538, 0.0
    %v541 = vmul.f32 %v535, 0.5
    %v542 = vmul.f32 %v536, 0.5
    %v543 = vmul.f32 %v541, 1.442695
    %v544 = vpow.pop %v543
    %v545 = vmul.f32 %v542, 1.442695
    %v546 = vpow.pop %v545
    %v547 = vld [vmem:[%s1] sm:$0xff]
    %v548 = vld [vmem:[%s1 + $0x8] sm:$0xff]
    %v549 = vmul.f32 %v547, %v544
    %v550 = vmul.f32 %v548, %v546
    %v551 = vadd.f32 %v549, %v511
    %v552 = vadd.f32 %v550, %v513
    %v553 = vld [vmem:[%s2] sm:$0xff]
    %v554 = vld [vmem:[%s2 + $0x8] sm:$0xff]
    %v555 = vmul.f32 %v539, 0.5
    %v556 = vmul.f32 %v540, 0.5
    %v557 = vmul.f32 %v555, 1.442695
    %v558 = vpow.pop %v557
    %v559 = vmul.f32 %v556, 1.442695
    %v560 = vpow.pop %v559
    %v561 = vmul.f32 %v553, %v558
    %v562 = vmul.f32 %v554, %v560
    %v563 = vadd.f32 %v561, %v523
    %v564 = vadd.f32 %v562, %v525
    %v565 = vadd.f32 %v551, %v563
    %v566 = vadd.f32 %v552, %v564
    %v567 = vsub.f32 %v60, %v565
    %v568 = vsub.f32 %v61, %v566
    %v569 = vmul.f32 %v567, %v567
    %v570 = vmul.f32 %v568, %v568
    %v571 = vadd.f32 %v569, 0.0002
    %v572 = vadd.f32 %v570, 0.0002
    %v573 = vrcp.pop %v571
    %v574 = vmul.f32 3.0, %v573
    %v575 = vrcp.pop %v572
    %v576 = vmul.f32 3.0, %v575
    %v577 = vld [vmem:[%s3] sm:$0xff]
    %v578 = vld [vmem:[%s3 + $0x8] sm:$0xff]
    %v579 = vrsqrt.pop %v574
    %v580 = vrsqrt.pop %v576
    %v581 = vmul.f32 %v577, %v579
    %v582 = vmul.f32 %v578, %v580
    %v583 = vadd.f32 %v581, %v563
    %v584 = vadd.f32 %v582, %v564
    %587 = vrot.lane.b32.xlu0 %v511, 16
    %v588 = vpop.permute.xlu0 %587
    %589 = vrot.lane.b32.xlu0 %v513, 16
    %v590 = vpop.permute.xlu0 %589
    %vm591 = vcmask 130048
    %v592 = vsel %vm591, %v588, %v590
    %v595 = vsel %vm591, 0.0, %v588
    %596 = vrot.lane.b32.xlu0 %v511, 112
    %v597 = vpop.permute.xlu0 %596
    %598 = vrot.lane.b32.xlu0 %v513, 112
    %v599 = vpop.permute.xlu0 %598
    %vm600 = vcmask 916480
    %v601 = vsel %vm600, %v597, %v599
    %v604 = vsel %vm600, %v599, 0.0
    %v605 = vld [vmem:[%s4] ss:$2 sm:$0x3]
    %606 = vrot.lane.b32.xlu0 %v511, 1
    %v607 = vpop.permute.xlu0 %606
    %608 = vrot.lane.b32.xlu0 %v513, 1
    %v609 = vpop.permute.xlu0 %608
    %vm610 = vcmask 7168
    %v611 = vsel %vm610, %v607, %v609
    %v614 = vsel %vm610, 0.0, %v607
    %v616 = vlaneseq
    %v617 = vshrl.u32 %v616, 7
    %v618 = vsub.s32 0, %v617
    %v619 = vrot.slane %v605, %v618
    %v620 = vlaneseq
    %v621 = vshrl.u32 %v620, 7
    %v622 = vsub.s32 1, %v621
    %v623 = vrot.slane %v605, %v622
    %v626 = vmul.f32 %v619, %v614
    %v627 = vmul.f32 %v623, %v611
    %s628 = scalar_lea.vmem %s4, 1
    %v629 = vld [vmem:[%s628] ss:$2 sm:$0x3]
    %630 = vrot.lane.b32.xlu0 %v511, 127
    %v631 = vpop.permute.xlu0 %630
    %632 = vrot.lane.b32.xlu0 %v513, 127
    %v633 = vpop.permute.xlu0 %632
    %vm634 = vcmask 1039360
    %v635 = vsel %vm634, %v631, %v633
    %v638 = vsel %vm634, %v633, 0.0
    %v640 = vlaneseq
    %v641 = vshrl.u32 %v640, 7
    %v642 = vsub.s32 0, %v641
    %v643 = vrot.slane %v629, %v642
    %v644 = vlaneseq
    %v645 = vshrl.u32 %v644, 7
    %v646 = vsub.s32 1, %v645
    %v647 = vrot.slane %v629, %v646
    %v650 = vmul.f32 %v643, %v635
    %v651 = vmul.f32 %v647, %v638
    %v652 = vadd.f32 %v595, %v601
    %v653 = vadd.f32 %v592, %v604
    %v654 = vadd.f32 %v652, %v626
    %v655 = vadd.f32 %v653, %v627
    %v656 = vadd.f32 %v654, %v650
    %v657 = vadd.f32 %v655, %v651
    %v658 = vmul.f32 %v656, 0.25
    %v659 = vmul.f32 %v657, 0.25
    %v660 = vsub.f32 %v511, %v658
    %v661 = vsub.f32 %v513, %v659
    %v662 = vmul.f32 %v660, %v660
    %v663 = vmul.f32 %v661, %v661
    %v664 = vmul.f32 %v535, 1.442695
    %v665 = vpow.pop %v664
    %v666 = vmul.f32 %v536, 1.442695
    %v667 = vpow.pop %v666
    %v668 = vmul.f32 %v665, 2.0
    %v669 = vmul.f32 %v667, 2.0
    %vm670 = vcmask 1043456
    %v671 = vsel %vm670, %v662, 0.0
    %v672 = vrot.slane %v671, 4
    %v673 = vadd.f32 %v671, %v672
    %v674 = vrot.slane %v673, 2
    %v675 = vadd.f32 %v673, %v674
    %v676 = vrot.slane %v675, 1
    %v677 = vadd.f32 %v675, %v676
    %v678 = vsel %vm670, %v663, 0.0
    %v679 = vrot.slane %v678, 4
    %v680 = vadd.f32 %v678, %v679
    %v681 = vrot.slane %v680, 2
    %v682 = vadd.f32 %v680, %v681
    %v683 = vrot.slane %v682, 1
    %v684 = vadd.f32 %v682, %v683
    %v685 = vsel %vm670, %v668, 0.0
    %v686 = vrot.slane %v685, 4
    %v687 = vadd.f32 %v685, %v686
    %v688 = vrot.slane %v687, 2
    %v689 = vadd.f32 %v687, %v688
    %v690 = vrot.slane %v689, 1
    %v691 = vadd.f32 %v689, %v690
    %v692 = vsel %vm670, %v669, 0.0
    %v693 = vrot.slane %v692, 4
    %v694 = vadd.f32 %v692, %v693
    %v695 = vrot.slane %v694, 2
    %v696 = vadd.f32 %v694, %v695
    %v697 = vrot.slane %v696, 1
    %v698 = vadd.f32 %v696, %v697
    %v699 = vsel %vm670, %v535, 0.0
    %v700 = vrot.slane %v699, 4
    %v701 = vadd.f32 %v699, %v700
    %v702 = vrot.slane %v701, 2
    %v703 = vadd.f32 %v701, %v702
    %v704 = vrot.slane %v703, 1
    %v705 = vadd.f32 %v703, %v704
    %v706 = vsel %vm670, %v536, 0.0
    %v707 = vrot.slane %v706, 4
    %v708 = vadd.f32 %v706, %v707
    %v709 = vrot.slane %v708, 2
    %v710 = vadd.f32 %v708, %v709
    %v711 = vrot.slane %v710, 1
    %v712 = vadd.f32 %v710, %v711
    %v713 = vadd.f32 %v677, %v691
    %v714 = vadd.f32 %v684, %v698
    %v715 = vadd.f32 %v713, 0.0002
    %v716 = vadd.f32 %v714, 0.0002
    %v717 = vrcp.pop %v715
    %v718 = vmul.f32 6.0, %v717
    %v719 = vrcp.pop %v716
    %v720 = vmul.f32 6.0, %v719
    %v721 = vmul.f32 %v677, %v718
    %v722 = vmul.f32 %v684, %v720
    %v723 = vmul.f32 %v691, %v718
    %v724 = vmul.f32 %v698, %v720
    %v725 = vsub.f32 %v723, %v705
    %v726 = vsub.f32 %v724, %v712
    %v729 = vrot.slane %v662, 4
    %v730 = vrot.slane %v663, 4
    %v733 = vsel %vm670, %v729, 0.0
    %v734 = vrot.slane %v733, 4
    %v735 = vadd.f32 %v733, %v734
    %v736 = vrot.slane %v735, 2
    %v737 = vadd.f32 %v735, %v736
    %v738 = vrot.slane %v737, 1
    %v739 = vadd.f32 %v737, %v738
    %v740 = vsel %vm670, %v730, 0.0
    %v741 = vrot.slane %v740, 4
    %v742 = vadd.f32 %v740, %v741
    %v743 = vrot.slane %v742, 2
    %v744 = vadd.f32 %v742, %v743
    %v745 = vrot.slane %v744, 1
    %v746 = vadd.f32 %v744, %v745
    %v749 = vrot.slane %v668, 4
    %v750 = vrot.slane %v669, 4
    %v753 = vsel %vm670, %v749, 0.0
    %v754 = vrot.slane %v753, 4
    %v755 = vadd.f32 %v753, %v754
    %v756 = vrot.slane %v755, 2
    %v757 = vadd.f32 %v755, %v756
    %v758 = vrot.slane %v757, 1
    %v759 = vadd.f32 %v757, %v758
    %v760 = vsel %vm670, %v750, 0.0
    %v761 = vrot.slane %v760, 4
    %v762 = vadd.f32 %v760, %v761
    %v763 = vrot.slane %v762, 2
    %v764 = vadd.f32 %v762, %v763
    %v765 = vrot.slane %v764, 1
    %v766 = vadd.f32 %v764, %v765
    %v769 = vrot.slane %v535, 4
    %v770 = vrot.slane %v536, 4
    %v773 = vsel %vm670, %v769, 0.0
    %v774 = vrot.slane %v773, 4
    %v775 = vadd.f32 %v773, %v774
    %v776 = vrot.slane %v775, 2
    %v777 = vadd.f32 %v775, %v776
    %v778 = vrot.slane %v777, 1
    %v779 = vadd.f32 %v777, %v778
    %v780 = vsel %vm670, %v770, 0.0
    %v781 = vrot.slane %v780, 4
    %v782 = vadd.f32 %v780, %v781
    %v783 = vrot.slane %v782, 2
    %v784 = vadd.f32 %v782, %v783
    %v785 = vrot.slane %v784, 1
    %v786 = vadd.f32 %v784, %v785
    %v787 = vadd.f32 %v739, %v759
    %v788 = vadd.f32 %v746, %v766
    %v789 = vadd.f32 %v787, 0.0002
    %v790 = vadd.f32 %v788, 0.0002
    %v791 = vrcp.pop %v789
    %v792 = vmul.f32 6.0, %v791
    %v793 = vrcp.pop %v790
    %v794 = vmul.f32 6.0, %v793
    %v795 = vmul.f32 %v739, %v792
    %v796 = vmul.f32 %v746, %v794
    %v797 = vmul.f32 %v759, %v792
    %v798 = vmul.f32 %v766, %v794
    %v799 = vsub.f32 %v797, %v779
    %v800 = vsub.f32 %v798, %v786
    %vm801 = vcmask 1040384
    %v802 = vsel %vm801, %v718, %v792
    %v803 = vsel %vm801, %v720, %v794
    %v804 = vsel %vm801, %v721, %v795
    %v805 = vsel %vm801, %v722, %v796
    %v806 = vsel %vm801, %v725, %v799
    %v807 = vsel %vm801, %v726, %v800
    %v808 = vmul.f32 %v567, %v574
    %v809 = vmul.f32 %v568, %v576
    %v810 = vmul.f32 %v808, %v567
    %v811 = vmul.f32 %v809, %v568
    %v812 = vmul.f32 %v523, %v523
    %v813 = vmul.f32 %v525, %v525
    %v814 = vmul.f32 %v539, 1.442695
    %v815 = vpow.pop %v814
    %v816 = vmul.f32 %v540, 1.442695
    %v817 = vpow.pop %v816
    %v818 = vsub.f32 %v815, %v539
    %v819 = vsub.f32 %v817, %v540
    %v820 = vadd.f32 %v551, %v552
    %821 = vadd.xlane.f32.xlu0 %v820
    %v822 = vpop.xlane.xlu0 %821
    %v823 = vmul.f32 %v822, 0.00390625
    %v824 = vsub.f32 %v551, %v823
    %v825 = vsub.f32 %v552, %v823
    %v826 = vmul.f32 %v824, %v824
    %v827 = vmul.f32 %v825, %v825
    %v828 = vadd.f32 %v826, %v827
    %829 = vadd.xlane.f32.xlu0 %v828
    %v830 = vpop.xlane.xlu0 %829
    %v831 = vmul.f32 %v830, 0.00390625
    %v832 = vadd.f32 %v831, 1e-05
    %v833 = vrsqrt.pop %v832
    %v834 = vmul.f32 %v824, %v833
    %v835 = vmul.f32 %v825, %v833
    %v836 = vld [vmem:[%s9] sm:$0xff]
    %838 = vset.pattern.permute.xlu0 0
    %839 = vperm.xlu0 %838, %v836
    %v840 = vpop.permute.xlu0 %839
    %v842 = vmul.f32 %v834, %v840
    %v843 = vmul.f32 %v835, %v840
    %v844 = vld [vmem:[%s10] sm:$0xff]
    %846 = vset.pattern.permute.xlu0 0
    %847 = vperm.xlu0 %846, %v844
    %v848 = vpop.permute.xlu0 %847
    %v850 = vadd.f32 %v842, %v848
    %v851 = vadd.f32 %v843, %v848
    %v852 = vadd.f32 %v574, %v576
    %853 = vadd.xlane.f32.xlu0 %v852
    %v854 = vpop.xlane.xlu0 %853
    %v855 = vrot.slane %v854, 4
    %v856 = vadd.f32 %v854, %v855
    %v857 = vrot.slane %v856, 2
    %v858 = vadd.f32 %v856, %v857
    %v859 = vrot.slane %v858, 1
    %v860 = vadd.f32 %v858, %v859
    %861 = vst [vmem:[#allocation15] sm:$0x1] %v860
    %862 = vst [vmem:[#allocation2] sm:$0xff] %v850
    %863 = vst [vmem:[#allocation2 + $0x8] sm:$0xff] %v851
    %864 = vst [vmem:[#allocation4] sm:$0xff] %v810
    %865 = vst [vmem:[#allocation4 + $0x8] sm:$0xff] %v811
    %v868 = vcombine.low %v804, %v805
    %v870 = vunpack.c.l.s4 1983009808
    %v871 = vunpack.c.0.s8 %v870
    %v872 = vlaneseq
    %v873 = vshrl.u32 %v872, 7
    %v874 = vsub.s32 %v871, %v873
    %v875 = vrot.slane %v868, %v874
    %877 = vst [vmem:[#allocation6] sm:$0xf] %v875
    %v880 = vcombine.low %v806, %v807
    %v882 = vunpack.c.l.s4 1983009808
    %v883 = vunpack.c.0.s8 %v882
    %v884 = vlaneseq
    %v885 = vshrl.u32 %v884, 7
    %v886 = vsub.s32 %v883, %v885
    %v887 = vrot.slane %v880, %v886
    %889 = vst [vmem:[#allocation7] sm:$0xf] %v887
    %890 = vst [vmem:[#allocation9] sm:$0xff] %v812
    %891 = vst [vmem:[#allocation9 + $0x8] sm:$0xff] %v813
    %892 = vst [vmem:[#allocation10] sm:$0xff] %v818
    %893 = vst [vmem:[#allocation10 + $0x8] sm:$0xff] %v819
    %894 = vst [vmem:[#allocation12] sm:$0xff] %v574
    %895 = vst [vmem:[#allocation12 + $0x8] sm:$0xff] %v576
    %v898 = vcombine.low %v802, %v803
    %v900 = vunpack.c.l.s4 1983009808
    %v901 = vunpack.c.0.s8 %v900
    %v902 = vlaneseq
    %v903 = vshrl.u32 %v902, 7
    %v904 = vsub.s32 %v901, %v903
    %v905 = vrot.slane %v898, %v904
    %907 = vst [vmem:[#allocation13] sm:$0xf] %v905
    %v908 = vpack.c.bf16 %v551, %v551
    %v909 = vpack.c.bf16 %v552, %v552
    %v912 = vunpack.c.l.b16 %v908
    %v913 = vunpack.c.l.b16 %v909
    %v914 = vpack.c.b16 %v913, %v912
    %916 = vst [vmem:[#allocation16] sm:$0xff] %v914
    %v917 = vpack.c.bf16 %v511, %v511
    %v918 = vpack.c.bf16 %v513, %v513
    %v921 = vunpack.c.l.b16 %v917
    %v922 = vunpack.c.l.b16 %v918
    %v923 = vpack.c.b16 %v922, %v921
    %925 = vst [vmem:[#allocation18] sm:$0xff] %v923
    %v926 = vpack.c.bf16 %v544, %v544
    %v927 = vpack.c.bf16 %v546, %v546
    %v930 = vunpack.c.l.b16 %v926
    %v931 = vunpack.c.l.b16 %v927
    %v932 = vpack.c.b16 %v931, %v930
    %934 = vst [vmem:[#allocation19] sm:$0xff] %v932
    %v935 = vpack.c.bf16 %v583, %v583
    %v936 = vpack.c.bf16 %v584, %v584
    %v939 = vunpack.c.l.b16 %v935
    %v940 = vunpack.c.l.b16 %v936
    %v941 = vpack.c.b16 %v940, %v939
    %943 = vst [vmem:[#allocation21] sm:$0xff] %v941
    %v944 = vpack.c.bf16 %v563, %v563
    %v945 = vpack.c.bf16 %v564, %v564
    %v948 = vunpack.c.l.b16 %v944
    %v949 = vunpack.c.l.b16 %v945
    %v950 = vpack.c.b16 %v949, %v948
    %952 = vst [vmem:[#allocation22] sm:$0xff] %v950
    // Predicated region
    $region46: #{tpu_custom_call.1} parent=1 // pred_check
      _
    $region47: #{tpu_custom_call.1} parent=1 // pred_check_branch
      %954 = sbr.rel (0) target = $region49
    $region48: #{tpu_custom_call.1} parent=1 // pred_region
      %s956 = ssub.s32 256, 256
      %957 = vsyncadd [#allocation3], %s956
      %s959 = sshll.u32 [#allocation2], 4
      %s960 = int_to_ptr.vmem [resolvable:$true] %s959
      %962 = dma.vmem_to_hbm [thread:$0]  %s960, 256, %s11, [#allocation3]
    $region49: #{tpu_custom_call.1} parent=1 // pred_fallthru
      _
    // Predicated region
    $region50: #{tpu_custom_call.1} parent=1 // pred_check
      _
    $region51: #{tpu_custom_call.1} parent=1 // pred_check_branch
      %964 = sbr.rel (0) target = $region53
    $region52: #{tpu_custom_call.1} parent=1 // pred_region
      %s966 = ssub.s32 256, 256
      %967 = vsyncadd [#allocation5], %s966
      %s969 = sshll.u32 [#allocation4], 4
      %s970 = int_to_ptr.vmem [resolvable:$true] %s969
      %972 = dma.vmem_to_hbm [thread:$0]  %s970, 256, %s12, [#allocation5]
    $region53: #{tpu_custom_call.1} parent=1 // pred_fallthru
      _
    // Predicated region
    $region54: #{tpu_custom_call.1} parent=1 // pred_check
      _
    $region55: #{tpu_custom_call.1} parent=1 // pred_check_branch
      %974 = sbr.rel (0) target = $region57
    $region56: #{tpu_custom_call.1} parent=1 // pred_region
      %s976 = ssub.s32 64, 64
      %977 = vsyncadd [#allocation5], %s976
      %s979 = sshll.u32 [#allocation6], 4
      %s980 = int_to_ptr.vmem [resolvable:$true] %s979
      %982 = dma.vmem_to_hbm [thread:$0]  %s980, 64, %s13, [#allocation5]
    $region57: #{tpu_custom_call.1} parent=1 // pred_fallthru
      _
    // Predicated region
    $region58: #{tpu_custom_call.1} parent=1 // pred_check
      _
    $region59: #{tpu_custom_call.1} parent=1 // pred_check_branch
      %984 = sbr.rel (0) target = $region61
    $region60: #{tpu_custom_call.1} parent=1 // pred_region
      %s986 = ssub.s32 64, 64
      %987 = vsyncadd [#allocation8], %s986
      %s989 = sshll.u32 [#allocation7], 4
      %s990 = int_to_ptr.vmem [resolvable:$true] %s989
      %992 = dma.vmem_to_hbm [thread:$0]  %s990, 64, %s14, [#allocation8]
    $region61: #{tpu_custom_call.1} parent=1 // pred_fallthru
      _
    // Predicated region
    $region62: #{tpu_custom_call.1} parent=1 // pred_check
      _
    $region63: #{tpu_custom_call.1} parent=1 // pred_check_branch
      %994 = sbr.rel (0) target = $region65
    $region64: #{tpu_custom_call.1} parent=1 // pred_region
      %s996 = ssub.s32 256, 256
      %997 = vsyncadd [#allocation8], %s996
      %s999 = sshll.u32 [#allocation9], 4
      %s1000 = int_to_ptr.vmem [resolvable:$true] %s999
      %1002 = dma.vmem_to_hbm [thread:$0]  %s1000, 256, %s15, [#allocation8]
    $region65: #{tpu_custom_call.1} parent=1 // pred_fallthru
      _
    // Predicated region
    $region66: #{tpu_custom_call.1} parent=1 // pred_check
      _
    $region67: #{tpu_custom_call.1} parent=1 // pred_check_branch
      %1004 = sbr.rel (0) target = $region69
    $region68: #{tpu_custom_call.1} parent=1 // pred_region
      %s1006 = ssub.s32 256, 256
      %1007 = vsyncadd [#allocation11], %s1006
      %s1009 = sshll.u32 [#allocation10], 4
      %s1010 = int_to_ptr.vmem [resolvable:$true] %s1009
      %1012 = dma.vmem_to_hbm [thread:$0]  %s1010, 256, %s16, [#allocation11]
    $region69: #{tpu_custom_call.1} parent=1 // pred_fallthru
      _
    // Predicated region
    $region70: #{tpu_custom_call.1} parent=1 // pred_check
      _
    $region71: #{tpu_custom_call.1} parent=1 // pred_check_branch
      %1014 = sbr.rel (0) target = $region73
    $region72: #{tpu_custom_call.1} parent=1 // pred_region
      %s1016 = ssub.s32 256, 256
      %1017 = vsyncadd [#allocation11], %s1016
      %s1019 = sshll.u32 [#allocation12], 4
      %s1020 = int_to_ptr.vmem [resolvable:$true] %s1019
      %1022 = dma.vmem_to_hbm [thread:$0]  %s1020, 256, %s17, [#allocation11]
    $region73: #{tpu_custom_call.1} parent=1 // pred_fallthru
      _
    // Predicated region
    $region74: #{tpu_custom_call.1} parent=1 // pred_check
      _
    $region75: #{tpu_custom_call.1} parent=1 // pred_check_branch
      %1024 = sbr.rel (0) target = $region77
    $region76: #{tpu_custom_call.1} parent=1 // pred_region
      %s1026 = ssub.s32 64, 64
      %1027 = vsyncadd [#allocation14], %s1026
      %s1029 = sshll.u32 [#allocation13], 4
      %s1030 = int_to_ptr.vmem [resolvable:$true] %s1029
      %1032 = dma.vmem_to_hbm [thread:$0]  %s1030, 64, %s18, [#allocation14]
    $region77: #{tpu_custom_call.1} parent=1 // pred_fallthru
      _
    // Predicated region
    $region78: #{tpu_custom_call.1} parent=1 // pred_check
      _
    $region79: #{tpu_custom_call.1} parent=1 // pred_check_branch
      %1034 = sbr.rel (0) target = $region81
    $region80: #{tpu_custom_call.1} parent=1 // pred_region
      %s1036 = ssub.s32 16, 16
      %1037 = vsyncadd [#allocation14], %s1036
      %s1039 = sshll.u32 [#allocation15], 4
      %s1040 = int_to_ptr.vmem [resolvable:$true] %s1039
      %1042 = dma.vmem_to_hbm [thread:$0]  %s1040, 16, %s19, [#allocation14]
    $region81: #{tpu_custom_call.1} parent=1 // pred_fallthru
      _
    // Predicated region
    $region82: #{tpu_custom_call.1} parent=1 // pred_check
      _
    $region83: #{tpu_custom_call.1} parent=1 // pred_check_branch
      %1044 = sbr.rel (0) target = $region85
    $region84: #{tpu_custom_call.1} parent=1 // pred_region
      %s1046 = ssub.s32 128, 128
      %1047 = vsyncadd [#allocation17], %s1046
      %s1049 = sshll.u32 [#allocation16], 4
      %s1050 = int_to_ptr.vmem [resolvable:$true] %s1049
      %1052 = dma.vmem_to_hbm [thread:$0]  %s1050, 128, %s20, [#allocation17]
    $region85: #{tpu_custom_call.1} parent=1 // pred_fallthru
      _
    // Predicated region
    $region86: #{tpu_custom_call.1} parent=1 // pred_check
      _
    $region87: #{tpu_custom_call.1} parent=1 // pred_check_branch
      %1054 = sbr.rel (0) target = $region89
    $region88: #{tpu_custom_call.1} parent=1 // pred_region
      %s1056 = ssub.s32 128, 128
      %1057 = vsyncadd [#allocation17], %s1056
      %s1059 = sshll.u32 [#allocation18], 4
      %s1060 = int_to_ptr.vmem [resolvable:$true] %s1059
      %1062 = dma.vmem_to_hbm [thread:$0]  %s1060, 128, %s21, [#allocation17]
    $region89: #{tpu_custom_call.1} parent=1 // pred_fallthru
      _
    // Predicated region
    $region90: #{tpu_custom_call.1} parent=1 // pred_check
      _
    $region91: #{tpu_custom_call.1} parent=1 // pred_check_branch
      %1064 = sbr.rel (0) target = $region93
    $region92: #{tpu_custom_call.1} parent=1 // pred_region
      %s1066 = ssub.s32 128, 128
      %1067 = vsyncadd [#allocation20], %s1066
      %s1069 = sshll.u32 [#allocation19], 4
      %s1070 = int_to_ptr.vmem [resolvable:$true] %s1069
      %1072 = dma.vmem_to_hbm [thread:$0]  %s1070, 128, %s22, [#allocation20]
    $region93: #{tpu_custom_call.1} parent=1 // pred_fallthru
      _
    // Predicated region
    $region94: #{tpu_custom_call.1} parent=1 // pred_check
      _
    $region95: #{tpu_custom_call.1} parent=1 // pred_check_branch
      %1074 = sbr.rel (0) target = $region97
    $region96: #{tpu_custom_call.1} parent=1 // pred_region
      %s1076 = ssub.s32 128, 128
      %1077 = vsyncadd [#allocation20], %s1076
      %s1079 = sshll.u32 [#allocation21], 4
      %s1080 = int_to_ptr.vmem [resolvable:$true] %s1079
      %1082 = dma.vmem_to_hbm [thread:$0]  %s1080, 128, %s23, [#allocation20]
    $region97: #{tpu_custom_call.1} parent=1 // pred_fallthru
      _
    // Predicated region
    $region98: #{tpu_custom_call.1} parent=1 // pred_check
      _
    $region99: #{tpu_custom_call.1} parent=1 // pred_check_branch
      %1084 = sbr.rel (0) target = $region101
    $region100: #{tpu_custom_call.1} parent=1 // pred_region
      %s1086 = ssub.s32 128, 128
      %1087 = vsyncadd [#allocation23], %s1086
      %s1089 = sshll.u32 [#allocation22], 4
      %s1090 = int_to_ptr.vmem [resolvable:$true] %s1089
      %1092 = dma.vmem_to_hbm [thread:$0]  %s1090, 128, %s24, [#allocation23]
    $region101: #{tpu_custom_call.1} parent=1 // pred_fallthru
      _
    // Predicated region
    $region102: #{tpu_custom_call.1} parent=1 // pred_check
      _
    $region103: #{tpu_custom_call.1} parent=1 // pred_check_branch
      %1094 = sbr.rel (0) target = $region105
    $region104: #{tpu_custom_call.1} parent=1 // pred_region
      %1095 = dma.done [#allocation3], 256
    $region105: #{tpu_custom_call.1} parent=1 // pred_fallthru
      _
    // Predicated region
    $region106: #{tpu_custom_call.1} parent=1 // pred_check
      _
    $region107: #{tpu_custom_call.1} parent=1 // pred_check_branch
      %1097 = sbr.rel (0) target = $region109
    $region108: #{tpu_custom_call.1} parent=1 // pred_region
      %1098 = dma.done [#allocation5], 256
    $region109: #{tpu_custom_call.1} parent=1 // pred_fallthru
      _
    // Predicated region
    $region110: #{tpu_custom_call.1} parent=1 // pred_check
      _
    $region111: #{tpu_custom_call.1} parent=1 // pred_check_branch
      %1100 = sbr.rel (0) target = $region113
    $region112: #{tpu_custom_call.1} parent=1 // pred_region
      %1101 = dma.done [#allocation5], 64
    $region113: #{tpu_custom_call.1} parent=1 // pred_fallthru
      _
    // Predicated region
    $region114: #{tpu_custom_call.1} parent=1 // pred_check
      _
    $region115: #{tpu_custom_call.1} parent=1 // pred_check_branch
      %1103 = sbr.rel (0) target = $region117
    $region116: #{tpu_custom_call.1} parent=1 // pred_region
      %1104 = dma.done [#allocation8], 64
    $region117: #{tpu_custom_call.1} parent=1 // pred_fallthru
      _
    // Predicated region
    $region118: #{tpu_custom_call.1} parent=1 // pred_check
      _
    $region119: #{tpu_custom_call.1} parent=1 // pred_check_branch
      %1106 = sbr.rel (0) target = $region121
    $region120: #{tpu_custom_call.1} parent=1 // pred_region
      %1107 = dma.done [#allocation8], 256
    $region121: #{tpu_custom_call.1} parent=1 // pred_fallthru
      _
    // Predicated region
    $region122: #{tpu_custom_call.1} parent=1 // pred_check
      _
    $region123: #{tpu_custom_call.1} parent=1 // pred_check_branch
      %1109 = sbr.rel (0) target = $region125
    $region124: #{tpu_custom_call.1} parent=1 // pred_region
      %1110 = dma.done [#allocation11], 256
    $region125: #{tpu_custom_call.1} parent=1 // pred_fallthru
      _
    // Predicated region
    $region126: #{tpu_custom_call.1} parent=1 // pred_check
      _
    $region127: #{tpu_custom_call.1} parent=1 // pred_check_branch
      %1112 = sbr.rel (0) target = $region129
    $region128: #{tpu_custom_call.1} parent=1 // pred_region
      %1113 = dma.done [#allocation11], 256
    $region129: #{tpu_custom_call.1} parent=1 // pred_fallthru
      _
    // Predicated region
    $region130: #{tpu_custom_call.1} parent=1 // pred_check
      _
    $region131: #{tpu_custom_call.1} parent=1 // pred_check_branch
      %1115 = sbr.rel (0) target = $region133
    $region132: #{tpu_custom_call.1} parent=1 // pred_region
      %1116 = dma.done [#allocation14], 64
    $region133: #{tpu_custom_call.1} parent=1 // pred_fallthru
      _
    // Predicated region
    $region134: #{tpu_custom_call.1} parent=1 // pred_check
      _
    $region135: #{tpu_custom_call.1} parent=1 // pred_check_branch
      %1118 = sbr.rel (0) target = $region137
    $region136: #{tpu_custom_call.1} parent=1 // pred_region
      %1119 = dma.done [#allocation14], 16
    $region137: #{tpu_custom_call.1} parent=1 // pred_fallthru
      _
    // Predicated region
    $region138: #{tpu_custom_call.1} parent=1 // pred_check
      _
    $region139: #{tpu_custom_call.1} parent=1 // pred_check_branch
      %1121 = sbr.rel (0) target = $region141
    $region140: #{tpu_custom_call.1} parent=1 // pred_region
      %1122 = dma.done [#allocation17], 128
    $region141: #{tpu_custom_call.1} parent=1 // pred_fallthru
      _
    // Predicated region
    $region142: #{tpu_custom_call.1} parent=1 // pred_check
      _
    $region143: #{tpu_custom_call.1} parent=1 // pred_check_branch
      %1124 = sbr.rel (0) target = $region145
    $region144: #{tpu_custom_call.1} parent=1 // pred_region
      %1125 = dma.done [#allocation17], 128
    $region145: #{tpu_custom_call.1} parent=1 // pred_fallthru
      _
    // Predicated region
    $region146: #{tpu_custom_call.1} parent=1 // pred_check
      _
    $region147: #{tpu_custom_call.1} parent=1 // pred_check_branch
      %1127 = sbr.rel (0) target = $region149
    $region148: #{tpu_custom_call.1} parent=1 // pred_region
      %1128 = dma.done [#allocation20], 128
    $region149: #{tpu_custom_call.1} parent=1 // pred_fallthru
      _
    // Predicated region
    $region150: #{tpu_custom_call.1} parent=1 // pred_check
      _
    $region151: #{tpu_custom_call.1} parent=1 // pred_check_branch
      %1130 = sbr.rel (0) target = $region153
    $region152: #{tpu_custom_call.1} parent=1 // pred_region
      %1131 = dma.done [#allocation20], 128
    $region153: #{tpu_custom_call.1} parent=1 // pred_fallthru
      _
    // Predicated region
    $region154: #{tpu_custom_call.1} parent=1 // pred_check
      _
    $region155: #{tpu_custom_call.1} parent=1 // pred_check_branch
      %1133 = sbr.rel (0) target = $region157
    $region156: #{tpu_custom_call.1} parent=1 // pred_region
      %1134 = dma.done [#allocation23], 128
    $region157: #{tpu_custom_call.1} parent=1 // pred_fallthru
      _
    %1135 = vsyncpa [#allocation3], 1
    %1136 = vsyncpa [#allocation5], 1
    %1137 = vsyncpa [#allocation8], 1
    %1138 = vsyncpa [#allocation11], 1
    %1139 = vsyncpa [#allocation14], 1
    %1140 = vsyncpa [#allocation17], 1
    %1141 = vsyncpa [#allocation20], 1
    %1142 = vsyncpa [#allocation23], 1

</llo_original>
